<compile_context>
chip_gen: v7x
topology: tpu7x:2x2x1
jax: 0.10.0
libtpu: 0.0.40
codegen_flags: <defaults>
</compile_context>

<pallas_src>
import jax
import jax.numpy as jnp
from jax.experimental import pallas as pl
from jax.experimental.pallas import tpu as pltpu

# Contract the last dim of both operands: A(m,k) . B(n,k) -> (m,n)  ("NT" dot).
_NT_DIMS = (((1,), (1,)), ((), ()))


def _sigmoid(x):
    # sigmoid(x) == 0.5*tanh(x/2) + 0.5 : one EUP op per element instead of
    # exp + divide.  Kept in f32 (v5e has no bf16 EUP path).
    # TODO(synk): on v6e/v7x a bf16 tanh would roughly double EUP throughput.
    return 0.5 * jnp.tanh(0.5 * x) + 0.5


def _ffn_kernel(x_ref, w1_ref, b1_ref, w2_ref, b2_ref, o_ref):
    """One (tile_n, E) token tile, natural HBM layout in and out.

    Compute is lane-dense (tokens on the 128-wide lane axis) for both matmul
    results and both sigmoids; only the final store transposes back.
    """
    # hT = sigmoid(W1 @ x^T + b1) -> (H, tile_n). The NT dot contracts the E
    # axis of both operands, so x^T is never materialized.
    hT = jax.lax.dot_general(w1_ref[...], x_ref[...], _NT_DIMS,
                             preferred_element_type=jnp.float32)
    hT = _sigmoid(hT + b1_ref[...].astype(jnp.float32))
    # TODO(synk): nn.Dropout(0.1) is identity here (eval mode); training-mode
    # dropout would need pltpu.prng_seed + pltpu.stateful_bernoulli + 1/(1-p).
    yT = jnp.dot(w2_ref[...], hT.astype(w2_ref.dtype),
                 preferred_element_type=jnp.float32)               # (E, tile_n)
    yT = _sigmoid(yT + b2_ref[...].astype(jnp.float32))
    # Transpose back to the natural (tile_n, E) layout for the store; XLU slot
    # is idle here so this hides under the HBM/EUP work.
    o_ref[...] = jnp.transpose(yT).astype(o_ref.dtype)


def _round_up(x, m):
    return ((x + m - 1) // m) * m


def _num_tensorcores():
    """Best-effort TensorCore count (2 on v7x, else 1). Defaults to 1."""
    try:
        info = pltpu.get_tpu_info()
    except Exception:
        return 1
    for attr in ("num_cores", "core_count", "num_tensorcores",
                 "tensorcore_count", "cores_per_chip"):
        v = getattr(info, attr, None)
        if isinstance(v, int) and v >= 1:
            return v
    return 1


def _choose_tile_n(n_tokens, max_tile_n, num_cores):
    """Largest lane-aligned (multiple of 128) token tile that fits the policy.

    Single-TC chips (v5e/v6e): biggest tile possible -> fewest grid steps.
    Multi-TC (v7x): keep enough steps (~4 per core) to shard + pipeline, but
    never shrink tiles below 1024 tokens.
    """
    max_tile = max(128, _round_up(max_tile_n, 128))
    tile = max(128, min(max_tile, (n_tokens // 128) * 128))
    if num_cores > 1:
        per_step = _round_up(pl.cdiv(n_tokens, 4 * num_cores), 128)
        tile = max(128, min(tile, max(1024, per_step)))
    return tile


def feedforward(x, w1, b1, w2, b2, *, tile_n=None, max_tile_n=8192,
                min_pallas_tokens=512):
    """FeedForward forward pass (eval mode).

    x  : (..., E)            activations (f32 or bf16)
    w1 : (H, E), b1: (H,)    first Linear, PyTorch (out_features, in_features)
    w2 : (E, H), b2: (E,)    second Linear
    Returns an array with the same shape/dtype as x.
    """
    orig_shape = x.shape
    E = orig_shape[-1]
    H = w1.shape[0]
    x2d = x.reshape(-1, E)
    N = x2d.shape[0]

    # Keep params in the activation dtype (tiny arrays; kernel math is f32).
    w1 = w1.astype(x.dtype)
    w2 = w2.astype(x.dtype)
    b1 = b1.astype(x.dtype)
    b2 = b2.astype(x.dtype)

    # Tiny-batch fallback: for a handful of tokens the 128-token lane tile and
    # call overhead dominate; XLA's fused dot chain wins.
    if N < max(min_pallas_tokens, 128):
        h = jax.nn.sigmoid(x2d.astype(jnp.float32) @ w1.T.astype(jnp.float32)
                           + b1.astype(jnp.float32))
        y = jax.nn.sigmoid(h @ w2.T.astype(jnp.float32)
                           + b2.astype(jnp.float32))
        return y.astype(x.dtype).reshape(orig_shape)

    num_cores = _num_tensorcores()
    if tile_n is None:
        tile_n = _choose_tile_n(N, max_tile_n, num_cores)
    else:
        tile_n = max(128, _round_up(tile_n, 128))
        tile_n = min(tile_n, max(128, (N // 128) * 128))

    grid = (pl.cdiv(N, tile_n),)
    itemsize = jnp.dtype(x.dtype).itemsize

    # VMEM: each (tile_n, E) block lane-pads E=16 -> 128 (8x inflation); x+out
    # double-buffered plus resident weights and relayout scratch.  Stay under
    # v7x's 64 MiB physical VMEM while lifting v5e's 16 MiB scoped default.
    blk_vmem = tile_n * 128 * itemsize
    vmem_limit = int(min(48 * 1024 * 1024, max(32 * 1024 * 1024, 5 * blk_vmem)))

    cost = pl.CostEstimate(
        flops=4 * N * E * H,                    # two matmuls
        transcendentals=N * (E + H),            # two sigmoids (tanh form)
        bytes_accessed=int(2 * N * E * itemsize + 2 * (H * E + H + E) * itemsize),
    )

    out = pl.pallas_call(
        _ffn_kernel,
        out_shape=jax.ShapeDtypeStruct((N, E), x.dtype),
        grid_spec=pltpu.PrefetchScalarGridSpec(
            num_scalar_prefetch=0,
            grid=grid,
            in_specs=[
                pl.BlockSpec((tile_n, E), lambda i: (i, 0)),   # x tile (natural layout)
                # Weights / biases: constant index_map -> resident in VMEM
                # across the whole grid (no per-step re-DMA).
                pl.BlockSpec((H, E), lambda i: (0, 0)),        # W1 (H, E)
                pl.BlockSpec((H, 1), lambda i: (0, 0)),        # b1
                pl.BlockSpec((E, H), lambda i: (0, 0)),        # W2 (E, H)
                pl.BlockSpec((E, 1), lambda i: (0, 0)),        # b2
            ],
            out_specs=pl.BlockSpec((tile_n, E), lambda i: (i, 0)),
        ),
        compiler_params=pltpu.CompilerParams(
            dimension_semantics=("parallel",),
            vmem_limit_bytes=vmem_limit,
        ),
        cost_estimate=cost,
    )(x2d, w1, b1.reshape(H, 1), w2, b2.reshape(E, 1))

    return out.reshape(orig_shape)


if __name__ == "__main__":
    endmember, hidden_dim = 16, 32

    key = jax.random.PRNGKey(0)
    kx, kw1, kb1, kw2, kb2, kx2 = jax.random.split(key, 6)

    # PyTorch Linear init U(-1/sqrt(fan_in), 1/sqrt(fan_in)); weights kept in
    # PyTorch-native (out_features, in_features) layout.
    bound1 = 1.0 / (endmember ** 0.5)
    bound2 = 1.0 / (hidden_dim ** 0.5)
    w1 = jax.random.uniform(kw1, (hidden_dim, endmember), jnp.float32, -bound1, bound1)
    b1 = jax.random.uniform(kb1, (hidden_dim,), jnp.float32, -bound1, bound1)
    w2 = jax.random.uniform(kw2, (endmember, hidden_dim), jnp.float32, -bound2, bound2)
    b2 = jax.random.uniform(kb2, (endmember,), jnp.float32, -bound2, bound2)

    def reference(xv):
        x2 = xv.reshape(-1, endmember).astype(jnp.float32)
        h = jax.nn.sigmoid(x2 @ w1.T + b1)
        y = jax.nn.sigmoid(h @ w2.T + b2)
        return y.reshape(xv.shape)

    # 1) Pallas-kernel path: batch=2, seq=300 -> 600 tokens (>= fallback
    #    threshold, and not a multiple of the 128-lane tile, so the ragged
    #    last grid block is exercised).
    xk = jax.random.normal(kx, (2, 300, endmember), dtype=jnp.float32)
    out = feedforward(xk, w1, b1, w2, b2)
    jax.block_until_ready(out)
    assert out.shape == xk.shape and out.dtype == xk.dtype
    assert jnp.allclose(out, reference(xk), atol=5e-5, rtol=1e-5), \
        "f32 Pallas mismatch vs reference"

    # bf16 I/O path (kernel math stays f32; only load/store dtype changes).
    out_bf16 = feedforward(
        xk.astype(jnp.bfloat16),
        w1.astype(jnp.bfloat16), b1.astype(jnp.bfloat16),
        w2.astype(jnp.bfloat16), b2.astype(jnp.bfloat16),
    )
    jax.block_until_ready(out_bf16)
    assert out_bf16.dtype == jnp.bfloat16
    assert jnp.allclose(out_bf16.astype(jnp.float32), reference(xk), atol=5e-2), \
        "bf16 Pallas mismatch vs reference"

    # 2) Tiny shape consistent with the module demo (batch=2, seq=8): takes
    #    the plain-jnp fallback (XLA beats a 128-token-padded kernel there).
    xs = jax.random.normal(kx2, (2, 8, endmember), dtype=jnp.float32)
    outs = feedforward(xs, w1, b1, w2, b2)
    jax.block_until_ready(outs)
    assert jnp.allclose(outs, reference(xs), atol=5e-5, rtol=1e-5), \
        "small-N fallback mismatch vs reference"

    print("KERNEL_OK")
</pallas_src>

<mosaic_0001>
module attributes {stable_mosaic.version = 11 : i64} {
  func.func @_ffn_kernel(%arg0: i32, %arg1: memref<512x16xf32, #tpu.memory_space<vmem>>, %arg2: memref<32x16xf32, #tpu.memory_space<vmem>>, %arg3: memref<32x1xf32, #tpu.memory_space<vmem>>, %arg4: memref<16x32xf32, #tpu.memory_space<vmem>>, %arg5: memref<16x1xf32, #tpu.memory_space<vmem>>, %arg6: memref<512x16xf32, #tpu.memory_space<vmem>>) attributes {dimension_semantics = [#tpu.dimension_semantics<parallel>], iteration_bounds = array<i64: 2>, scalar_prefetch = 0 : i64, scratch_operands = 0 : i64, tpu.core_type = #tpu.core_type<tc>, window_params = [{transform_indices = @transform_0, window_bounds = array<i64: 512, 16>}, {pipeline_mode = #tpu.pipeline_mode<synchronous>, transform_indices = @transform_1, window_bounds = array<i64: 32, 16>}, {pipeline_mode = #tpu.pipeline_mode<synchronous>, transform_indices = @transform_2, window_bounds = array<i64: 32, 1>}, {pipeline_mode = #tpu.pipeline_mode<synchronous>, transform_indices = @transform_3, window_bounds = array<i64: 16, 32>}, {pipeline_mode = #tpu.pipeline_mode<synchronous>, transform_indices = @transform_4, window_bounds = array<i64: 16, 1>}, {transform_indices = @transform_5, window_bounds = array<i64: 512, 16>}]} {
    %c0 = arith.constant 0 : index
    %c0_0 = arith.constant 0 : index
    %0 = vector.load %arg2[%c0, %c0_0] : memref<32x16xf32, #tpu.memory_space<vmem>>, vector<32x16xf32>
    %c0_1 = arith.constant 0 : index
    %c0_2 = arith.constant 0 : index
    %1 = vector.load %arg1[%c0_1, %c0_2] : memref<512x16xf32, #tpu.memory_space<vmem>>, vector<512x16xf32>
    %cst = arith.constant dense<0.000000e+00> : vector<32x512xf32>
    %2 = tpu.matmul %0, %1, %cst {dimension_numbers = #tpu.dot_dimension_numbers<[1], [1], [0], [0], [0, 0, 1, 0], [], []>} : vector<32x16xf32>, vector<512x16xf32>, vector<32x512xf32> -> vector<32x512xf32>
    %c0_3 = arith.constant 0 : index
    %c0_4 = arith.constant 0 : index
    %3 = vector.load %arg3[%c0_3, %c0_4] : memref<32x1xf32, #tpu.memory_space<vmem>>, vector<32x1xf32>
    %4 = vector.broadcast %3 : vector<32x1xf32> to vector<32x512xf32>
    %5 = arith.addf %2, %4 : vector<32x512xf32>
    %cst_5 = arith.constant 5.000000e-01 : f32
    %6 = vector.broadcast %cst_5 : f32 to vector<32x512xf32>
    %7 = arith.mulf %6, %5 : vector<32x512xf32>
    %8 = math.tanh %7 : vector<32x512xf32>
    %cst_6 = arith.constant 5.000000e-01 : f32
    %9 = vector.broadcast %cst_6 : f32 to vector<32x512xf32>
    %10 = arith.mulf %9, %8 : vector<32x512xf32>
    %cst_7 = arith.constant 5.000000e-01 : f32
    %11 = vector.broadcast %cst_7 : f32 to vector<32x512xf32>
    %12 = arith.addf %10, %11 : vector<32x512xf32>
    %c0_8 = arith.constant 0 : index
    %c0_9 = arith.constant 0 : index
    %13 = vector.load %arg4[%c0_8, %c0_9] : memref<16x32xf32, #tpu.memory_space<vmem>>, vector<16x32xf32>
    %cst_10 = arith.constant dense<0.000000e+00> : vector<16x512xf32>
    %14 = tpu.matmul %13, %12, %cst_10 {dimension_numbers = #tpu.dot_dimension_numbers<[1], [0], [0], [1], [0, 0, 1, 1], [], []>} : vector<16x32xf32>, vector<32x512xf32>, vector<16x512xf32> -> vector<16x512xf32>
    %c0_11 = arith.constant 0 : index
    %c0_12 = arith.constant 0 : index
    %15 = vector.load %arg5[%c0_11, %c0_12] : memref<16x1xf32, #tpu.memory_space<vmem>>, vector<16x1xf32>
    %16 = vector.broadcast %15 : vector<16x1xf32> to vector<16x512xf32>
    %17 = arith.addf %14, %16 : vector<16x512xf32>
    %cst_13 = arith.constant 5.000000e-01 : f32
    %18 = vector.broadcast %cst_13 : f32 to vector<16x512xf32>
    %19 = arith.mulf %18, %17 : vector<16x512xf32>
    %20 = math.tanh %19 : vector<16x512xf32>
    %cst_14 = arith.constant 5.000000e-01 : f32
    %21 = vector.broadcast %cst_14 : f32 to vector<16x512xf32>
    %22 = arith.mulf %21, %20 : vector<16x512xf32>
    %cst_15 = arith.constant 5.000000e-01 : f32
    %23 = vector.broadcast %cst_15 : f32 to vector<16x512xf32>
    %24 = arith.addf %22, %23 : vector<16x512xf32>
    %25 = tpu.transpose %24, [1, 0] : vector<16x512xf32> -> vector<512x16xf32>
    %c0_16 = arith.constant 0 : index
    %c0_17 = arith.constant 0 : index
    %26 = vector.load %arg6[%c0_16, %c0_17] : memref<512x16xf32, #tpu.memory_space<vmem>>, vector<512x16xf32>
    tpu.vector_store %arg6[%c0_16, %c0_17], %25 {strides = array<i32>} : memref<512x16xf32, #tpu.memory_space<vmem>>, vector<512x16xf32>,
    return
  }
  func.func @transform_0(%arg0: i32) -> (i32, i32) {
    %c0_i32 = arith.constant 0 : i32
    %c0_i32_0 = arith.constant 0 : i32
    return %arg0, %c0_i32 : i32, i32
  }
  func.func @transform_1(%arg0: i32) -> (i32, i32) {
    %c0_i32 = arith.constant 0 : i32
    %c0_i32_0 = arith.constant 0 : i32
    %c0_i32_1 = arith.constant 0 : i32
    return %c0_i32, %c0_i32_0 : i32, i32
  }
  func.func @transform_2(%arg0: i32) -> (i32, i32) {
    %c0_i32 = arith.constant 0 : i32
    %c0_i32_0 = arith.constant 0 : i32
    %c0_i32_1 = arith.constant 0 : i32
    return %c0_i32, %c0_i32_0 : i32, i32
  }
  func.func @transform_3(%arg0: i32) -> (i32, i32) {
    %c0_i32 = arith.constant 0 : i32
    %c0_i32_0 = arith.constant 0 : i32
    %c0_i32_1 = arith.constant 0 : i32
    return %c0_i32, %c0_i32_0 : i32, i32
  }
  func.func @transform_4(%arg0: i32) -> (i32, i32) {
    %c0_i32 = arith.constant 0 : i32
    %c0_i32_0 = arith.constant 0 : i32
    %c0_i32_1 = arith.constant 0 : i32
    return %c0_i32, %c0_i32_0 : i32, i32
  }
  func.func @transform_5(%arg0: i32) -> (i32, i32) {
    %c0_i32 = arith.constant 0 : i32
    %c0_i32_0 = arith.constant 0 : i32
    return %arg0, %c0_i32 : i32, i32
  }
}

</mosaic_0001>

<llo_original>
// kernel: tpu_custom_call.1
$region0: #{tpu_custom_call.1}
  #allocation0 [shape = 'u32[]', space=smem, size = 0x4, offset = 0x4, fixed_abs, tag = 'smem constant byte address 0x4 - core index']
  #allocation1 [shape = 'u32[144,128]{1,0:T(1,128)}', space=vmem, size = 0x12000, scoped, tag = 'internal scratch']
  %s0 = inlined_call_operand.vmem [shape: f32[600,16], index: 0, kind: input, shape index: {}]
  %s1 = inlined_call_operand.vmem [shape: f32[32,16], index: 1, kind: input, shape index: {}]
  %s2 = inlined_call_operand.vmem [shape: f32[32,1], index: 2, kind: input, shape index: {}]
  %s3 = inlined_call_operand.vmem [shape: f32[16,32], index: 3, kind: input, shape index: {}]
  %s4 = inlined_call_operand.vmem [shape: f32[16,1], index: 4, kind: input, shape index: {}]
  %s5 = inlined_call_operand.vmem [shape: f32[600,16], index: 5, kind: output, shape index: {}]
  %s6 = sld [smem:[#allocation0]]
  $region101: #{tpu_custom_call.1} parent=0
    _
  %s8 = ssub.s32 1, %s6
  %s9 = scalar_select 0, %s8, %s6
  $region1: #{tpu_custom_call.1} parent=0
    #allocation2 [shape = 'u8[524288]{0}', space=vmem, size = 0x80000, scoped, tag = 'output window, operand 0']
    loop: start=0, step=1, limit=4
    $region2: #{tpu_custom_call.1} parent=1 // loop_pre_header
      _
    $region3: #{tpu_custom_call.1} parent=1 // loop_header
      %s11 = sphi 0, %s15
      %p12 = scmp.ge.s32.totalorder %s11, 4
      %s21 = sphi 0, %s23
      %s24 = sphi 0, %s21
      %s25 = sphi 0, %s24
      %s41 = sphi 0, %s25
      %s45 = sphi 0, %s45
      %s47 = sphi 0, %s45
      %s48 = sphi 0, %s47
      %s62 = sphi 0, %s48
      %s66 = sphi 0, %s66
      %s68 = sphi 0, %s66
      %s69 = sphi 0, %s68
      %s83 = sphi 0, %s69
      %s87 = sphi 0, %s87
      %s89 = sphi 0, %s87
      %s90 = sphi 0, %s89
      %s104 = sphi 0, %s90
      %s108 = sphi 0, %s108
      %s110 = sphi 0, %s108
      %s111 = sphi 0, %s110
      %s125 = sphi 0, %s111
      %s131 = sphi 0, %s133
      %s134 = sphi 0, %s131
      %s135 = sphi 0, %s134
      %s151 = sphi 0, %s135
    $region4: #{tpu_custom_call.1} parent=1 // loop_header_branch
      %14 = sbr.rel (%p12) target = $region8
    $region5: #{tpu_custom_call.1} parent=1 // loop_body
      %s16 = ssub.s32 %s11, 1
      %s17 = ssub.s32 %s11, 2
      %s18 = sadd.s32 %s11, 1
      %s19 = ssub.s32 %s11, %s18
      %p20 = scmp.eq.s32.totalorder %s19, 0
      %s22 = sadd.s32 %s21, 1
      %s23 = scalar_select %p20, %s21, %s22
      %p26 = pneg %p20
      %p27 = scmp.eq.s32.totalorder %s11, 1
      %p28 = por %p26, %p27
      %p29 = scmp.ne.s32.totalorder %s21, %s24
      %p30 = scmp.eq.s32.totalorder %s11, 0
      %p31 = por %p29, %p30
      %p32 = scmp.ne.s32.totalorder %s21, %s24
      %p33 = scmp.eq.s32.totalorder %s16, 1
      %p34 = por %p32, %p33
      %p35 = scmp.ne.s32.totalorder %s24, %s25
      %p36 = scmp.eq.s32.totalorder %s16, 0
      %p37 = por %p35, %p36
      %p38 = scmp.ne.s32.totalorder %s24, %s25
      %p39 = scmp.eq.s32.totalorder %s17, 1
      %p40 = por %p38, %p39
      %p42 = scmp.ne.s32.totalorder %s25, %s41
      %p43 = scmp.eq.s32.totalorder %s17, 0
      %p44 = por %p42, %p43
      %s46 = sadd.s32 %s45, 1
      %p49 = scmp.eq.s32.totalorder %s11, 1
      %p50 = scmp.ne.s32.totalorder %s45, %s47
      %p51 = scmp.eq.s32.totalorder %s11, 0
      %p52 = por %p50, %p51
      %p53 = scmp.ne.s32.totalorder %s45, %s47
      %p54 = scmp.eq.s32.totalorder %s16, 1
      %p55 = por %p53, %p54
      %p56 = scmp.ne.s32.totalorder %s47, %s48
      %p57 = scmp.eq.s32.totalorder %s16, 0
      %p58 = por %p56, %p57
      %p59 = scmp.ne.s32.totalorder %s47, %s48
      %p60 = scmp.eq.s32.totalorder %s17, 1
      %p61 = por %p59, %p60
      %p63 = scmp.ne.s32.totalorder %s48, %s62
      %p64 = scmp.eq.s32.totalorder %s17, 0
      %p65 = por %p63, %p64
      %s67 = sadd.s32 %s66, 1
      %p70 = scmp.eq.s32.totalorder %s11, 1
      %p71 = scmp.ne.s32.totalorder %s66, %s68
      %p72 = scmp.eq.s32.totalorder %s11, 0
      %p73 = por %p71, %p72
      %p74 = scmp.ne.s32.totalorder %s66, %s68
      %p75 = scmp.eq.s32.totalorder %s16, 1
      %p76 = por %p74, %p75
      %p77 = scmp.ne.s32.totalorder %s68, %s69
      %p78 = scmp.eq.s32.totalorder %s16, 0
      %p79 = por %p77, %p78
      %p80 = scmp.ne.s32.totalorder %s68, %s69
      %p81 = scmp.eq.s32.totalorder %s17, 1
      %p82 = por %p80, %p81
      %p84 = scmp.ne.s32.totalorder %s69, %s83
      %p85 = scmp.eq.s32.totalorder %s17, 0
      %p86 = por %p84, %p85
      %s88 = sadd.s32 %s87, 1
      %p91 = scmp.eq.s32.totalorder %s11, 1
      %p92 = scmp.ne.s32.totalorder %s87, %s89
      %p93 = scmp.eq.s32.totalorder %s11, 0
      %p94 = por %p92, %p93
      %p95 = scmp.ne.s32.totalorder %s87, %s89
      %p96 = scmp.eq.s32.totalorder %s16, 1
      %p97 = por %p95, %p96
      %p98 = scmp.ne.s32.totalorder %s89, %s90
      %p99 = scmp.eq.s32.totalorder %s16, 0
      %p100 = por %p98, %p99
      %p101 = scmp.ne.s32.totalorder %s89, %s90
      %p102 = scmp.eq.s32.totalorder %s17, 1
      %p103 = por %p101, %p102
      %p105 = scmp.ne.s32.totalorder %s90, %s104
      %p106 = scmp.eq.s32.totalorder %s17, 0
      %p107 = por %p105, %p106
      %s109 = sadd.s32 %s108, 1
      %p112 = scmp.eq.s32.totalorder %s11, 1
      %p113 = scmp.ne.s32.totalorder %s108, %s110
      %p114 = scmp.eq.s32.totalorder %s11, 0
      %p115 = por %p113, %p114
      %p116 = scmp.ne.s32.totalorder %s108, %s110
      %p117 = scmp.eq.s32.totalorder %s16, 1
      %p118 = por %p116, %p117
      %p119 = scmp.ne.s32.totalorder %s110, %s111
      %p120 = scmp.eq.s32.totalorder %s16, 0
      %p121 = por %p119, %p120
      %p122 = scmp.ne.s32.totalorder %s110, %s111
      %p123 = scmp.eq.s32.totalorder %s17, 1
      %p124 = por %p122, %p123
      %p126 = scmp.ne.s32.totalorder %s111, %s125
      %p127 = scmp.eq.s32.totalorder %s17, 0
      %p128 = por %p126, %p127
      %s129 = ssub.s32 %s11, %s18
      %p130 = scmp.eq.s32.totalorder %s129, 0
      %s132 = sadd.s32 %s131, 1
      %s133 = scalar_select %p130, %s131, %s132
      %p136 = pneg %p130
      %p137 = scmp.eq.s32.totalorder %s11, 1
      %p138 = por %p136, %p137
      %p139 = scmp.ne.s32.totalorder %s131, %s134
      %p140 = scmp.eq.s32.totalorder %s11, 0
      %p141 = por %p139, %p140
      %p142 = scmp.ne.s32.totalorder %s131, %s134
      %p143 = scmp.eq.s32.totalorder %s16, 1
      %p144 = por %p142, %p143
      %p145 = scmp.ne.s32.totalorder %s134, %s135
      %p146 = scmp.eq.s32.totalorder %s16, 0
      %p147 = por %p145, %p146
      %p148 = scmp.ne.s32.totalorder %s134, %s135
      %p149 = scmp.eq.s32.totalorder %s17, 1
      %p150 = por %p148, %p149
      %p152 = scmp.ne.s32.totalorder %s135, %s151
      %p153 = scmp.eq.s32.totalorder %s17, 0
      %p154 = por %p152, %p153
      %p155 = scmp.le.s32.totalorder 1, %s11
      %p156 = scmp.lt.s32.totalorder %s11, 3
      %p157 = pnand %p155, %p156
      %p158 = pneg %p157
      // Predicated region
      $region9: #{tpu_custom_call.1} parent=5 // pred_check
        _
      $region10: #{tpu_custom_call.1} parent=5 // pred_check_branch
        %160 = sbr.rel (%p157) target = $region12
      $region11: #{tpu_custom_call.1} parent=5 // pred_region
        %s161 = ssub.s32 %s11, 1
        // Predicated region
        $region13: #{tpu_custom_call.1} parent=11 // pred_check
          %p162 = pneg %p58
        $region14: #{tpu_custom_call.1} parent=11 // pred_check_branch
          %164 = sbr.rel (%p162) target = $region16
        $region15: #{tpu_custom_call.1} parent=11 // pred_region
          _
        $region16: #{tpu_custom_call.1} parent=11 // pred_fallthru
          _
        // Predicated region
        $region17: #{tpu_custom_call.1} parent=11 // pred_check
          %p165 = pneg %p79
        $region18: #{tpu_custom_call.1} parent=11 // pred_check_branch
          %167 = sbr.rel (%p165) target = $region20
        $region19: #{tpu_custom_call.1} parent=11 // pred_region
          _
        $region20: #{tpu_custom_call.1} parent=11 // pred_fallthru
          _
        // Predicated region
        $region21: #{tpu_custom_call.1} parent=11 // pred_check
          %p168 = pneg %p100
        $region22: #{tpu_custom_call.1} parent=11 // pred_check_branch
          %170 = sbr.rel (%p168) target = $region24
        $region23: #{tpu_custom_call.1} parent=11 // pred_region
          _
        $region24: #{tpu_custom_call.1} parent=11 // pred_fallthru
          _
        // Predicated region
        $region25: #{tpu_custom_call.1} parent=11 // pred_check
          %p171 = pneg %p121
        $region26: #{tpu_custom_call.1} parent=11 // pred_check_branch
          %173 = sbr.rel (%p171) target = $region28
        $region27: #{tpu_custom_call.1} parent=11 // pred_region
          _
        $region28: #{tpu_custom_call.1} parent=11 // pred_fallthru
          _
      $region12: #{tpu_custom_call.1} parent=5 // pred_fallthru
        _
      %p174 = scmp.lt.s32.totalorder %s11, 2
      // Predicated region
      $region29: #{tpu_custom_call.1} parent=5 // pred_check
        %p175 = pneg %p174
      $region30: #{tpu_custom_call.1} parent=5 // pred_check_branch
        %177 = sbr.rel (%p175) target = $region32
      $region31: #{tpu_custom_call.1} parent=5 // pred_region
        // Predicated region
        $region33: #{tpu_custom_call.1} parent=31 // pred_check
          %p178 = pneg %p31
        $region34: #{tpu_custom_call.1} parent=31 // pred_check_branch
          %180 = sbr.rel (%p178) target = $region36
        $region35: #{tpu_custom_call.1} parent=31 // pred_region
          %s181 = smul.u32 64, %s11
          %s182 = ssub.s32 75, %s181
          %p183 = scmp.lt.s32.totalorder %s182, 64
          %s184 = scalar_select %p183, %s182, 64
          %s185 = smul.u32 128, %s184
          %p186 = scmp.lt.s32.totalorder %s181, 74
          %s187 = scalar_select %p186, %s181, 74
          %s188 = smul.addr %s187, 8
          %s189 = scalar_lea.vmem %s0, %s188
          %s190 = smul.u32 64, %s11
          %s191 = ssub.s32 75, %s190
          %p192 = scmp.lt.s32.totalorder %s191, 64
          %s193 = scalar_select %p192, %s191, 64
          %s194 = smul.u32 128, %s193
        $region36: #{tpu_custom_call.1} parent=31 // pred_fallthru
          _
      $region32: #{tpu_custom_call.1} parent=5 // pred_fallthru
        _
      %p195 = scmp.le.s32.totalorder 1, %s11
      %p196 = scmp.lt.s32.totalorder %s11, 3
      %p197 = pnand %p195, %p196
      %p198 = pneg %p197
      // Predicated region
      $region37: #{tpu_custom_call.1} parent=5 // pred_check
        _
      $region38: #{tpu_custom_call.1} parent=5 // pred_check_branch
        %200 = sbr.rel (%p197) target = $region40
      $region39: #{tpu_custom_call.1} parent=5 // pred_region
        %s201 = ssub.s32 %s11, 1
        %s202 = smul.u32 64, %s16
        %s203 = ssub.s32 75, %s202
        %p204 = scmp.lt.s32.totalorder %s203, 64
        %s205 = scalar_select %p204, %s203, 64
        %s206 = smul.u32 128, %s205
        %p207 = scmp.lt.s32.totalorder %s202, 74
        %s208 = scalar_select %p207, %s202, 74
        %s209 = smul.addr %s208, 8
        %s210 = scalar_lea.vmem %s0, %s209
        %p211 = pneg %p37
        %p212 = pneg %p34
        %p213 = pneg %p58
        %p214 = pneg %p55
        %p215 = pneg %p79
        %p216 = pneg %p76
        %p217 = pneg %p100
        %p218 = pneg %p97
        %p219 = pneg %p121
        %p220 = pneg %p118
        %p221 = pneg %p147
        %p222 = pneg %p144
        %s223 = sand.u32 %s134, 1
        %s224 = sand.u32 %s134, 1
        %s225 = smul.addr %s224, 512
        %s226 = scalar_lea.vmem [#allocation2], %s225
        %s227 = smul.u32 64, %s16
        %s228 = ssub.s32 75, %s227
        %p229 = scmp.lt.s32.totalorder %s228, 64
        %s230 = scalar_select %p229, %s228, 64
        %s231 = smul.u32 128, %s230
        %p232 = scmp.lt.s32.totalorder %s227, 74
        %s233 = scalar_select %p232, %s227, 74
        %s234 = smul.addr %s233, 8
        %s235 = scalar_lea.vmem %s0, %s234
        %s236 = smul.u32 64, %s16
        %s237 = ssub.s32 75, %s236
        %p238 = scmp.lt.s32.totalorder %s237, 64
        %s239 = scalar_select %p238, %s237, 64
        %s240 = smul.u32 128, %s239
        %s241 = smul.u32 64, %s16
        %s242 = ssub.s32 75, %s241
        %p243 = scmp.lt.s32.totalorder %s242, 64
        %s244 = scalar_select %p243, %s242, 64
        %s245 = smul.u32 128, %s244
        %v246 = vld [vmem:[%s1] sm:$0xff]
        %v247 = vld [vmem:[%s1 + $0x8] sm:$0xff]
        %v248 = vld [vmem:[%s1 + $0x10] sm:$0xff]
        %v249 = vld [vmem:[%s1 + $0x18] sm:$0xff]
        %v250 = vld [vmem:[%s235] sm:$0xff]
        %v251 = vld [vmem:[%s235 + $0x8] sm:$0xff]
        %v252 = vld [vmem:[%s235 + $0x10] sm:$0xff]
        %v253 = vld [vmem:[%s235 + $0x18] sm:$0xff]
        %v254 = vld [vmem:[%s235 + $0x20] sm:$0xff]
        %v255 = vld [vmem:[%s235 + $0x28] sm:$0xff]
        %v256 = vld [vmem:[%s235 + $0x30] sm:$0xff]
        %v257 = vld [vmem:[%s235 + $0x38] sm:$0xff]
        %v258 = vld [vmem:[%s235 + $0x40] sm:$0xff]
        %v259 = vld [vmem:[%s235 + $0x48] sm:$0xff]
        %v260 = vld [vmem:[%s235 + $0x50] sm:$0xff]
        %v261 = vld [vmem:[%s235 + $0x58] sm:$0xff]
        %v262 = vld [vmem:[%s235 + $0x60] sm:$0xff]
        %v263 = vld [vmem:[%s235 + $0x68] sm:$0xff]
        %v264 = vld [vmem:[%s235 + $0x70] sm:$0xff]
        %v265 = vld [vmem:[%s235 + $0x78] sm:$0xff]
        %v266 = vld [vmem:[%s235 + $0x80] sm:$0xff]
        %v267 = vld [vmem:[%s235 + $0x88] sm:$0xff]
        %v268 = vld [vmem:[%s235 + $0x90] sm:$0xff]
        %v269 = vld [vmem:[%s235 + $0x98] sm:$0xff]
        %v270 = vld [vmem:[%s235 + $0xa0] sm:$0xff]
        %v271 = vld [vmem:[%s235 + $0xa8] sm:$0xff]
        %v272 = vld [vmem:[%s235 + $0xb0] sm:$0xff]
        %v273 = vld [vmem:[%s235 + $0xb8] sm:$0xff]
        %v274 = vld [vmem:[%s235 + $0xc0] sm:$0xff]
        %v275 = vld [vmem:[%s235 + $0xc8] sm:$0xff]
        %v276 = vld [vmem:[%s235 + $0xd0] sm:$0xff]
        %v277 = vld [vmem:[%s235 + $0xd8] sm:$0xff]
        %v278 = vld [vmem:[%s235 + $0xe0] sm:$0xff]
        %v279 = vld [vmem:[%s235 + $0xe8] sm:$0xff]
        %v280 = vld [vmem:[%s235 + $0xf0] sm:$0xff]
        %v281 = vld [vmem:[%s235 + $0xf8] sm:$0xff]
        %v282 = vld [vmem:[%s235 + $0x100] sm:$0xff]
        %v283 = vld [vmem:[%s235 + $0x108] sm:$0xff]
        %v284 = vld [vmem:[%s235 + $0x110] sm:$0xff]
        %v285 = vld [vmem:[%s235 + $0x118] sm:$0xff]
        %v286 = vld [vmem:[%s235 + $0x120] sm:$0xff]
        %v287 = vld [vmem:[%s235 + $0x128] sm:$0xff]
        %v288 = vld [vmem:[%s235 + $0x130] sm:$0xff]
        %v289 = vld [vmem:[%s235 + $0x138] sm:$0xff]
        %v290 = vld [vmem:[%s235 + $0x140] sm:$0xff]
        %v291 = vld [vmem:[%s235 + $0x148] sm:$0xff]
        %v292 = vld [vmem:[%s235 + $0x150] sm:$0xff]
        %v293 = vld [vmem:[%s235 + $0x158] sm:$0xff]
        %v294 = vld [vmem:[%s235 + $0x160] sm:$0xff]
        %v295 = vld [vmem:[%s235 + $0x168] sm:$0xff]
        %v296 = vld [vmem:[%s235 + $0x170] sm:$0xff]
        %v297 = vld [vmem:[%s235 + $0x178] sm:$0xff]
        %v298 = vld [vmem:[%s235 + $0x180] sm:$0xff]
        %v299 = vld [vmem:[%s235 + $0x188] sm:$0xff]
        %v300 = vld [vmem:[%s235 + $0x190] sm:$0xff]
        %v301 = vld [vmem:[%s235 + $0x198] sm:$0xff]
        %v302 = vld [vmem:[%s235 + $0x1a0] sm:$0xff]
        %v303 = vld [vmem:[%s235 + $0x1a8] sm:$0xff]
        %v304 = vld [vmem:[%s235 + $0x1b0] sm:$0xff]
        %v305 = vld [vmem:[%s235 + $0x1b8] sm:$0xff]
        %v306 = vld [vmem:[%s235 + $0x1c0] sm:$0xff]
        %v307 = vld [vmem:[%s235 + $0x1c8] sm:$0xff]
        %v308 = vld [vmem:[%s235 + $0x1d0] sm:$0xff]
        %v309 = vld [vmem:[%s235 + $0x1d8] sm:$0xff]
        %v310 = vld [vmem:[%s235 + $0x1e0] sm:$0xff]
        %v311 = vld [vmem:[%s235 + $0x1e8] sm:$0xff]
        %v312 = vld [vmem:[%s235 + $0x1f0] sm:$0xff]
        %v313 = vld [vmem:[%s235 + $0x1f8] sm:$0xff]
        %v314 = vld [vmem:[%s2] sm:$0xff]
        %v315 = vld [vmem:[%s2 + $0x8] sm:$0xff]
        %v316 = vld [vmem:[%s2 + $0x10] sm:$0xff]
        %v317 = vld [vmem:[%s2 + $0x18] sm:$0xff]
        %319 = vset.pattern.permute.xlu0 0
        %320 = vperm.xlu0 %319, %v314
        %v321 = vpop.permute.xlu0 %320
        %324 = vset.pattern.permute.xlu0 0
        %325 = vperm.xlu0 %324, %v315
        %v326 = vpop.permute.xlu0 %325
        %329 = vset.pattern.permute.xlu0 0
        %330 = vperm.xlu0 %329, %v316
        %v331 = vpop.permute.xlu0 %330
        %334 = vset.pattern.permute.xlu0 0
        %335 = vperm.xlu0 %334, %v317
        %v336 = vpop.permute.xlu0 %335
        %vm338 = vcmask 130048
        %v340 = vsel %vm338, %v246, 0
        %v343 = vsel %vm338, %v247, 0
        %v346 = vsel %vm338, %v248, 0
        %v349 = vsel %vm338, %v249, 0
        %v352 = vsel %vm338, %v250, 0
        %v355 = vsel %vm338, %v251, 0
        %v358 = vsel %vm338, %v252, 0
        %v361 = vsel %vm338, %v253, 0
        %v364 = vsel %vm338, %v254, 0
        %v367 = vsel %vm338, %v255, 0
        %v370 = vsel %vm338, %v256, 0
        %v373 = vsel %vm338, %v257, 0
        %v376 = vsel %vm338, %v258, 0
        %v379 = vsel %vm338, %v259, 0
        %v382 = vsel %vm338, %v260, 0
        %v385 = vsel %vm338, %v261, 0
        %v388 = vsel %vm338, %v262, 0
        %v391 = vsel %vm338, %v263, 0
        %v394 = vsel %vm338, %v264, 0
        %v397 = vsel %vm338, %v265, 0
        %v400 = vsel %vm338, %v266, 0
        %v403 = vsel %vm338, %v267, 0
        %v406 = vsel %vm338, %v268, 0
        %v409 = vsel %vm338, %v269, 0
        %v412 = vsel %vm338, %v270, 0
        %v415 = vsel %vm338, %v271, 0
        %v418 = vsel %vm338, %v272, 0
        %v421 = vsel %vm338, %v273, 0
        %v424 = vsel %vm338, %v274, 0
        %v427 = vsel %vm338, %v275, 0
        %v430 = vsel %vm338, %v276, 0
        %v433 = vsel %vm338, %v277, 0
        %v436 = vsel %vm338, %v278, 0
        %v439 = vsel %vm338, %v279, 0
        %v442 = vsel %vm338, %v280, 0
        %v445 = vsel %vm338, %v281, 0
        %v448 = vsel %vm338, %v282, 0
        %v451 = vsel %vm338, %v283, 0
        %v454 = vsel %vm338, %v284, 0
        %v457 = vsel %vm338, %v285, 0
        %v460 = vsel %vm338, %v286, 0
        %v463 = vsel %vm338, %v287, 0
        %v466 = vsel %vm338, %v288, 0
        %v469 = vsel %vm338, %v289, 0
        %v472 = vsel %vm338, %v290, 0
        %v475 = vsel %vm338, %v291, 0
        %v478 = vsel %vm338, %v292, 0
        %v481 = vsel %vm338, %v293, 0
        %v484 = vsel %vm338, %v294, 0
        %v487 = vsel %vm338, %v295, 0
        %v490 = vsel %vm338, %v296, 0
        %v493 = vsel %vm338, %v297, 0
        %v496 = vsel %vm338, %v298, 0
        %v499 = vsel %vm338, %v299, 0
        %v502 = vsel %vm338, %v300, 0
        %v505 = vsel %vm338, %v301, 0
        %v508 = vsel %vm338, %v302, 0
        %v511 = vsel %vm338, %v303, 0
        %v514 = vsel %vm338, %v304, 0
        %v517 = vsel %vm338, %v305, 0
        %v520 = vsel %vm338, %v306, 0
        %v523 = vsel %vm338, %v307, 0
        %v526 = vsel %vm338, %v308, 0
        %v529 = vsel %vm338, %v309, 0
        %v532 = vsel %vm338, %v310, 0
        %v535 = vsel %vm338, %v311, 0
        %v538 = vsel %vm338, %v312, 0
        %v541 = vsel %vm338, %v313, 0
        %543 = vmatprep.subr.mxu0 0.0
        %544 = vmatpush1.xpose.msra.mxu0 %v352
        %545 = vmatprep.subr.mxu0 0.0
        %546 = vmatpush1.xpose.msra.mxu0 %v355
        %547 = vmatprep.subr.mxu0 0.0
        %548 = vmatpush1.xpose.msra.mxu0 %v358
        %549 = vmatprep.subr.mxu0 0.0
        %550 = vmatpush1.xpose.msra.mxu0 %v361
        %551 = vmatprep.subr.mxu0 0.0
        %552 = vmatpush1.xpose.msra.mxu0 %v364
        %553 = vmatprep.subr.mxu0 0.0
        %554 = vmatpush1.xpose.msra.mxu0 %v367
        %555 = vmatprep.subr.mxu0 0.0
        %556 = vmatpush1.xpose.msra.mxu0 %v370
        %557 = vmatprep.subr.mxu0 0.0
        %558 = vmatpush1.xpose.msra.mxu0 %v373
        %559 = vmatprep.subr.mxu0 0.0
        %560 = vmatpush1.xpose.msra.mxu0 %v376
        %561 = vmatprep.subr.mxu0 0.0
        %562 = vmatpush1.xpose.msra.mxu0 %v379
        %563 = vmatprep.subr.mxu0 0.0
        %564 = vmatpush1.xpose.msra.mxu0 %v382
        %565 = vmatprep.subr.mxu0 0.0
        %566 = vmatpush1.xpose.msra.mxu0 %v385
        %567 = vmatprep.subr.mxu0 0.0
        %568 = vmatpush1.xpose.msra.mxu0 %v388
        %569 = vmatprep.subr.mxu0 0.0
        %570 = vmatpush1.xpose.msra.mxu0 %v391
        %571 = vmatprep.subr.mxu0 0.0
        %572 = vmatpush1.xpose.msra.mxu0 %v394
        %573 = vmatprep.subr.mxu0 0.0
        %574 = vmatpush1.xpose.msra.mxu0 %v397
        %575 = vmatprep.subr.mxu0 0.0
        %576 = vmatpush1.xpose.msra.mxu0 %v400
        %577 = vmatprep.subr.mxu0 0.0
        %578 = vmatpush1.xpose.msra.mxu0 %v403
        %579 = vmatprep.subr.mxu0 0.0
        %580 = vmatpush1.xpose.msra.mxu0 %v406
        %581 = vmatprep.subr.mxu0 0.0
        %582 = vmatpush1.xpose.msra.mxu0 %v409
        %583 = vmatprep.subr.mxu0 0.0
        %584 = vmatpush1.xpose.msra.mxu0 %v412
        %585 = vmatprep.subr.mxu0 0.0
        %586 = vmatpush1.xpose.msra.mxu0 %v415
        %587 = vmatprep.subr.mxu0 0.0
        %588 = vmatpush1.xpose.msra.mxu0 %v418
        %589 = vmatprep.subr.mxu0 0.0
        %590 = vmatpush1.xpose.msra.mxu0 %v421
        %591 = vmatprep.subr.mxu0 0.0
        %592 = vmatpush1.xpose.msra.mxu0 %v424
        %593 = vmatprep.subr.mxu0 0.0
        %594 = vmatpush1.xpose.msra.mxu0 %v427
        %595 = vmatprep.subr.mxu0 0.0
        %596 = vmatpush1.xpose.msra.mxu0 %v430
        %597 = vmatprep.subr.mxu0 0.0
        %598 = vmatpush1.xpose.msra.mxu0 %v433
        %599 = vmatprep.subr.mxu0 0.0
        %600 = vmatpush1.xpose.msra.mxu0 %v436
        %601 = vmatprep.subr.mxu0 0.0
        %602 = vmatpush1.xpose.msra.mxu0 %v439
        %603 = vmatprep.subr.mxu0 0.0
        %604 = vmatpush1.xpose.msra.mxu0 %v442
        %605 = vmatprep.subr.mxu0 0.0
        %606 = vmatpush1.xpose.msra.mxu0 %v445
        %607 = vmatprep.mubr.f32.mxu0 0.0
        %608 = vmatmul.mubr.f32.gmra.mrb[0].mxu0 %v340
        %v609 = vpop.f32.mrb[0].mxu0
        %v610 = vadd.f32 %v321, %v609
        %v611 = vpop.f32.mrb[0].mxu0
        %v612 = vadd.f32 %v321, %v611
        %613 = vmatprep.mubr.f32.mxu0 0.0
        %614 = vmatmul.mubr.f32.gmra.mrb[0].mxu0 %v343
        %v615 = vpop.f32.mrb[0].mxu0
        %v616 = vadd.f32 %v326, %v615
        %v617 = vpop.f32.mrb[0].mxu0
        %v618 = vadd.f32 %v326, %v617
        %619 = vmatprep.mubr.f32.mxu0 0.0
        %620 = vmatmul.mubr.f32.gmra.mrb[0].mxu0 %v346
        %v621 = vpop.f32.mrb[0].mxu0
        %v622 = vadd.f32 %v331, %v621
        %v623 = vpop.f32.mrb[0].mxu0
        %v624 = vadd.f32 %v331, %v623
        %625 = vmatprep.mubr.f32.mxu0 0.0
        %626 = vmatmul.mubr.f32.gmra.mrb[0].mxu0 %v349
        %v627 = vpop.f32.mrb[0].mxu0
        %v628 = vadd.f32 %v336, %v627
        %v629 = vpop.f32.mrb[0].mxu0
        %v630 = vadd.f32 %v336, %v629
        %631 = vdwg.mxu0
        %632 = vmatprep.subr.mxu0 0.0
        %633 = vmatpush1.xpose.msra.mxu0 %v448
        %634 = vmatprep.subr.mxu0 0.0
        %635 = vmatpush1.xpose.msra.mxu0 %v451
        %636 = vmatprep.subr.mxu0 0.0
        %637 = vmatpush1.xpose.msra.mxu0 %v454
        %638 = vmatprep.subr.mxu0 0.0
        %639 = vmatpush1.xpose.msra.mxu0 %v457
        %640 = vmatprep.subr.mxu0 0.0
        %641 = vmatpush1.xpose.msra.mxu0 %v460
        %642 = vmatprep.subr.mxu0 0.0
        %643 = vmatpush1.xpose.msra.mxu0 %v463
        %644 = vmatprep.subr.mxu0 0.0
        %645 = vmatpush1.xpose.msra.mxu0 %v466
        %646 = vmatprep.subr.mxu0 0.0
        %647 = vmatpush1.xpose.msra.mxu0 %v469
        %648 = vmatprep.subr.mxu0 0.0
        %649 = vmatpush1.xpose.msra.mxu0 %v472
        %650 = vmatprep.subr.mxu0 0.0
        %651 = vmatpush1.xpose.msra.mxu0 %v475
        %652 = vmatprep.subr.mxu0 0.0
        %653 = vmatpush1.xpose.msra.mxu0 %v478
        %654 = vmatprep.subr.mxu0 0.0
        %655 = vmatpush1.xpose.msra.mxu0 %v481
        %656 = vmatprep.subr.mxu0 0.0
        %657 = vmatpush1.xpose.msra.mxu0 %v484
        %658 = vmatprep.subr.mxu0 0.0
        %659 = vmatpush1.xpose.msra.mxu0 %v487
        %660 = vmatprep.subr.mxu0 0.0
        %661 = vmatpush1.xpose.msra.mxu0 %v490
        %662 = vmatprep.subr.mxu0 0.0
        %663 = vmatpush1.xpose.msra.mxu0 %v493
        %664 = vmatprep.subr.mxu0 0.0
        %665 = vmatpush1.xpose.msra.mxu0 %v496
        %666 = vmatprep.subr.mxu0 0.0
        %667 = vmatpush1.xpose.msra.mxu0 %v499
        %668 = vmatprep.subr.mxu0 0.0
        %669 = vmatpush1.xpose.msra.mxu0 %v502
        %670 = vmatprep.subr.mxu0 0.0
        %671 = vmatpush1.xpose.msra.mxu0 %v505
        %672 = vmatprep.subr.mxu0 0.0
        %673 = vmatpush1.xpose.msra.mxu0 %v508
        %674 = vmatprep.subr.mxu0 0.0
        %675 = vmatpush1.xpose.msra.mxu0 %v511
        %676 = vmatprep.subr.mxu0 0.0
        %677 = vmatpush1.xpose.msra.mxu0 %v514
        %678 = vmatprep.subr.mxu0 0.0
        %679 = vmatpush1.xpose.msra.mxu0 %v517
        %680 = vmatprep.subr.mxu0 0.0
        %681 = vmatpush1.xpose.msra.mxu0 %v520
        %682 = vmatprep.subr.mxu0 0.0
        %683 = vmatpush1.xpose.msra.mxu0 %v523
        %684 = vmatprep.subr.mxu0 0.0
        %685 = vmatpush1.xpose.msra.mxu0 %v526
        %686 = vmatprep.subr.mxu0 0.0
        %687 = vmatpush1.xpose.msra.mxu0 %v529
        %688 = vmatprep.subr.mxu0 0.0
        %689 = vmatpush1.xpose.msra.mxu0 %v532
        %690 = vmatprep.subr.mxu0 0.0
        %691 = vmatpush1.xpose.msra.mxu0 %v535
        %692 = vmatprep.subr.mxu0 0.0
        %693 = vmatpush1.xpose.msra.mxu0 %v538
        %694 = vmatprep.subr.mxu0 0.0
        %695 = vmatpush1.xpose.msra.mxu0 %v541
        %696 = vmatprep.mubr.f32.mxu0 0.0
        %697 = vmatmul.mubr.f32.gmra.mrb[0].mxu0 %v340
        %v698 = vpop.f32.mrb[0].mxu0
        %v699 = vadd.f32 %v321, %v698
        %v700 = vpop.f32.mrb[0].mxu0
        %v701 = vadd.f32 %v321, %v700
        %702 = vmatprep.mubr.f32.mxu0 0.0
        %703 = vmatmul.mubr.f32.gmra.mrb[0].mxu0 %v343
        %v704 = vpop.f32.mrb[0].mxu0
        %v705 = vadd.f32 %v326, %v704
        %v706 = vpop.f32.mrb[0].mxu0
        %v707 = vadd.f32 %v326, %v706
        %708 = vmatprep.mubr.f32.mxu0 0.0
        %709 = vmatmul.mubr.f32.gmra.mrb[0].mxu0 %v346
        %v710 = vpop.f32.mrb[0].mxu0
        %v711 = vadd.f32 %v331, %v710
        %v712 = vpop.f32.mrb[0].mxu0
        %v713 = vadd.f32 %v331, %v712
        %714 = vmatprep.mubr.f32.mxu0 0.0
        %715 = vmatmul.mubr.f32.gmra.mrb[0].mxu0 %v349
        %v716 = vpop.f32.mrb[0].mxu0
        %v717 = vadd.f32 %v336, %v716
        %v718 = vpop.f32.mrb[0].mxu0
        %v719 = vadd.f32 %v336, %v718
        %720 = vdwg.mxu0
        %v721 = vmul.f32 %v610, 0.5
        %v722 = vmul.f32 %v612, 0.5
        %v723 = vmul.f32 %v699, 0.5
        %v724 = vmul.f32 %v701, 0.5
        %v725 = vmul.f32 %v616, 0.5
        %v726 = vmul.f32 %v618, 0.5
        %v727 = vmul.f32 %v705, 0.5
        %v728 = vmul.f32 %v707, 0.5
        %v729 = vmul.f32 %v622, 0.5
        %v730 = vmul.f32 %v624, 0.5
        %v731 = vmul.f32 %v711, 0.5
        %v732 = vmul.f32 %v713, 0.5
        %v733 = vmul.f32 %v628, 0.5
        %v734 = vmul.f32 %v630, 0.5
        %v735 = vmul.f32 %v717, 0.5
        %v736 = vmul.f32 %v719, 0.5
        %v737 = vtanh.pop %v721
        %v738 = vtanh.pop %v722
        %v739 = vtanh.pop %v723
        %v740 = vtanh.pop %v724
        %v741 = vtanh.pop %v725
        %v742 = vtanh.pop %v726
        %v743 = vtanh.pop %v727
        %v744 = vtanh.pop %v728
        %v745 = vtanh.pop %v729
        %v746 = vtanh.pop %v730
        %v747 = vtanh.pop %v731
        %v748 = vtanh.pop %v732
        %v749 = vtanh.pop %v733
        %v750 = vtanh.pop %v734
        %v751 = vtanh.pop %v735
        %v752 = vtanh.pop %v736
        %v753 = vmul.f32 %v737, 0.5
        %v754 = vmul.f32 %v738, 0.5
        %v755 = vmul.f32 %v739, 0.5
        %v756 = vmul.f32 %v740, 0.5
        %v757 = vmul.f32 %v741, 0.5
        %v758 = vmul.f32 %v742, 0.5
        %v759 = vmul.f32 %v743, 0.5
        %v760 = vmul.f32 %v744, 0.5
        %v761 = vmul.f32 %v745, 0.5
        %v762 = vmul.f32 %v746, 0.5
        %v763 = vmul.f32 %v747, 0.5
        %v764 = vmul.f32 %v748, 0.5
        %v765 = vmul.f32 %v749, 0.5
        %v766 = vmul.f32 %v750, 0.5
        %v767 = vmul.f32 %v751, 0.5
        %v768 = vmul.f32 %v752, 0.5
        %v769 = vadd.f32 %v753, 0.5
        %v770 = vadd.f32 %v754, 0.5
        %v771 = vadd.f32 %v755, 0.5
        %v772 = vadd.f32 %v756, 0.5
        %v773 = vadd.f32 %v757, 0.5
        %v774 = vadd.f32 %v758, 0.5
        %v775 = vadd.f32 %v759, 0.5
        %v776 = vadd.f32 %v760, 0.5
        %v777 = vadd.f32 %v761, 0.5
        %v778 = vadd.f32 %v762, 0.5
        %v779 = vadd.f32 %v763, 0.5
        %v780 = vadd.f32 %v764, 0.5
        %v781 = vadd.f32 %v765, 0.5
        %v782 = vadd.f32 %v766, 0.5
        %v783 = vadd.f32 %v767, 0.5
        %v784 = vadd.f32 %v768, 0.5
        %v785 = vld [vmem:[%s3] sm:$0xff]
        %v786 = vld [vmem:[%s3 + $0x8] sm:$0xff]
        %v787 = vld [vmem:[%s4] sm:$0xff]
        %v788 = vld [vmem:[%s4 + $0x8] sm:$0xff]
        %790 = vset.pattern.permute.xlu0 0
        %791 = vperm.xlu0 %790, %v787
        %v792 = vpop.permute.xlu0 %791
        %795 = vset.pattern.permute.xlu0 0
        %796 = vperm.xlu0 %795, %v788
        %v797 = vpop.permute.xlu0 %796
        %vm799 = vcmask 261120
        %v801 = vsel %vm799, %v785, 0
        %v804 = vsel %vm799, %v786, 0
        %806 = vmatprep.subr.mxu0 %v770
        %807 = vmatpush1.msra.mxu0 %v769
        %808 = vmatprep.subr.mxu0 %v774
        %809 = vmatpush1.msra.mxu0 %v773
        %810 = vmatprep.subr.mxu0 %v778
        %811 = vmatpush1.msra.mxu0 %v777
        %812 = vmatprep.subr.mxu0 %v782
        %813 = vmatpush1.msra.mxu0 %v781
        %814 = vmatprep.subr.mxu0 0.0
        %815 = vmatpush1.msra.mxu0 0.0
        %816 = vmatprep.subr.mxu0 0.0
        %817 = vmatpush1.msra.mxu0 0.0
        %818 = vmatprep.subr.mxu0 0.0
        %819 = vmatpush1.msra.mxu0 0.0
        %820 = vmatprep.subr.mxu0 0.0
        %821 = vmatpush1.msra.mxu0 0.0
        %822 = vmatprep.subr.mxu0 0.0
        %823 = vmatpush1.msra.mxu0 0.0
        %824 = vmatprep.subr.mxu0 0.0
        %825 = vmatpush1.msra.mxu0 0.0
        %826 = vmatprep.subr.mxu0 0.0
        %827 = vmatpush1.msra.mxu0 0.0
        %828 = vmatprep.subr.mxu0 0.0
        %829 = vmatpush1.msra.mxu0 0.0
        %830 = vmatprep.subr.mxu0 0.0
        %831 = vmatpush1.msra.mxu0 0.0
        %832 = vmatprep.subr.mxu0 0.0
        %833 = vmatpush1.msra.mxu0 0.0
        %834 = vmatprep.subr.mxu0 0.0
        %835 = vmatpush1.msra.mxu0 0.0
        %836 = vmatprep.subr.mxu0 0.0
        %837 = vmatpush1.msra.mxu0 0.0
        %838 = vmatprep.subr.mxu0 0.0
        %839 = vmatpush1.msra.mxu0 0.0
        %840 = vmatprep.subr.mxu0 0.0
        %841 = vmatpush1.msra.mxu0 0.0
        %842 = vmatprep.subr.mxu0 0.0
        %843 = vmatpush1.msra.mxu0 0.0
        %844 = vmatprep.subr.mxu0 0.0
        %845 = vmatpush1.msra.mxu0 0.0
        %846 = vmatprep.subr.mxu0 0.0
        %847 = vmatpush1.msra.mxu0 0.0
        %848 = vmatprep.subr.mxu0 0.0
        %849 = vmatpush1.msra.mxu0 0.0
        %850 = vmatprep.subr.mxu0 0.0
        %851 = vmatpush1.msra.mxu0 0.0
        %852 = vmatprep.subr.mxu0 0.0
        %853 = vmatpush1.msra.mxu0 0.0
        %854 = vmatprep.subr.mxu0 0.0
        %855 = vmatpush1.msra.mxu0 0.0
        %856 = vmatprep.subr.mxu0 0.0
        %857 = vmatpush1.msra.mxu0 0.0
        %858 = vmatprep.subr.mxu0 0.0
        %859 = vmatpush1.msra.mxu0 0.0
        %860 = vmatprep.subr.mxu0 0.0
        %861 = vmatpush1.msra.mxu0 0.0
        %862 = vmatprep.subr.mxu0 0.0
        %863 = vmatpush1.msra.mxu0 0.0
        %864 = vmatprep.subr.mxu0 0.0
        %865 = vmatpush1.msra.mxu0 0.0
        %866 = vmatprep.subr.mxu0 0.0
        %867 = vmatpush1.msra.mxu0 0.0
        %868 = vmatprep.subr.mxu0 0.0
        %869 = vmatpush1.msra.mxu0 0.0
        %870 = vmatprep.mubr.f32.mxu0 0.0
        %871 = vmatmul.mubr.f32.gmra.mrb[0].mxu0 %v801
        %v872 = vpop.f32.mrb[0].mxu0
        %v873 = vadd.f32 %v792, %v872
        %v874 = vpop.f32.mrb[0].mxu0
        %v875 = vadd.f32 %v792, %v874
        %876 = vmatprep.mubr.f32.mxu0 0.0
        %877 = vmatmul.mubr.f32.gmra.mrb[0].mxu0 %v804
        %v878 = vpop.f32.mrb[0].mxu0
        %v879 = vadd.f32 %v797, %v878
        %v880 = vpop.f32.mrb[0].mxu0
        %v881 = vadd.f32 %v797, %v880
        %882 = vdwg.mxu0
        %883 = vmatprep.subr.mxu0 %v772
        %884 = vmatpush1.msra.mxu0 %v771
        %885 = vmatprep.subr.mxu0 %v776
        %886 = vmatpush1.msra.mxu0 %v775
        %887 = vmatprep.subr.mxu0 %v780
        %888 = vmatpush1.msra.mxu0 %v779
        %889 = vmatprep.subr.mxu0 %v784
        %890 = vmatpush1.msra.mxu0 %v783
        %891 = vmatprep.subr.mxu0 0.0
        %892 = vmatpush1.msra.mxu0 0.0
        %893 = vmatprep.subr.mxu0 0.0
        %894 = vmatpush1.msra.mxu0 0.0
        %895 = vmatprep.subr.mxu0 0.0
        %896 = vmatpush1.msra.mxu0 0.0
        %897 = vmatprep.subr.mxu0 0.0
        %898 = vmatpush1.msra.mxu0 0.0
        %899 = vmatprep.subr.mxu0 0.0
        %900 = vmatpush1.msra.mxu0 0.0
        %901 = vmatprep.subr.mxu0 0.0
        %902 = vmatpush1.msra.mxu0 0.0
        %903 = vmatprep.subr.mxu0 0.0
        %904 = vmatpush1.msra.mxu0 0.0
        %905 = vmatprep.subr.mxu0 0.0
        %906 = vmatpush1.msra.mxu0 0.0
        %907 = vmatprep.subr.mxu0 0.0
        %908 = vmatpush1.msra.mxu0 0.0
        %909 = vmatprep.subr.mxu0 0.0
        %910 = vmatpush1.msra.mxu0 0.0
        %911 = vmatprep.subr.mxu0 0.0
        %912 = vmatpush1.msra.mxu0 0.0
        %913 = vmatprep.subr.mxu0 0.0
        %914 = vmatpush1.msra.mxu0 0.0
        %915 = vmatprep.subr.mxu0 0.0
        %916 = vmatpush1.msra.mxu0 0.0
        %917 = vmatprep.subr.mxu0 0.0
        %918 = vmatpush1.msra.mxu0 0.0
        %919 = vmatprep.subr.mxu0 0.0
        %920 = vmatpush1.msra.mxu0 0.0
        %921 = vmatprep.subr.mxu0 0.0
        %922 = vmatpush1.msra.mxu0 0.0
        %923 = vmatprep.subr.mxu0 0.0
        %924 = vmatpush1.msra.mxu0 0.0
        %925 = vmatprep.subr.mxu0 0.0
        %926 = vmatpush1.msra.mxu0 0.0
        %927 = vmatprep.subr.mxu0 0.0
        %928 = vmatpush1.msra.mxu0 0.0
        %929 = vmatprep.subr.mxu0 0.0
        %930 = vmatpush1.msra.mxu0 0.0
        %931 = vmatprep.subr.mxu0 0.0
        %932 = vmatpush1.msra.mxu0 0.0
        %933 = vmatprep.subr.mxu0 0.0
        %934 = vmatpush1.msra.mxu0 0.0
        %935 = vmatprep.subr.mxu0 0.0
        %936 = vmatpush1.msra.mxu0 0.0
        %937 = vmatprep.subr.mxu0 0.0
        %938 = vmatpush1.msra.mxu0 0.0
        %939 = vmatprep.subr.mxu0 0.0
        %940 = vmatpush1.msra.mxu0 0.0
        %941 = vmatprep.subr.mxu0 0.0
        %942 = vmatpush1.msra.mxu0 0.0
        %943 = vmatprep.subr.mxu0 0.0
        %944 = vmatpush1.msra.mxu0 0.0
        %945 = vmatprep.subr.mxu0 0.0
        %946 = vmatpush1.msra.mxu0 0.0
        %947 = vmatprep.mubr.f32.mxu0 0.0
        %948 = vmatmul.mubr.f32.gmra.mrb[0].mxu0 %v801
        %v949 = vpop.f32.mrb[0].mxu0
        %v950 = vadd.f32 %v792, %v949
        %v951 = vpop.f32.mrb[0].mxu0
        %v952 = vadd.f32 %v792, %v951
        %953 = vmatprep.mubr.f32.mxu0 0.0
        %954 = vmatmul.mubr.f32.gmra.mrb[0].mxu0 %v804
        %v955 = vpop.f32.mrb[0].mxu0
        %v956 = vadd.f32 %v797, %v955
        %v957 = vpop.f32.mrb[0].mxu0
        %v958 = vadd.f32 %v797, %v957
        %959 = vdwg.mxu0
        %v960 = vmul.f32 %v873, 0.5
        %v961 = vmul.f32 %v875, 0.5
        %v962 = vmul.f32 %v950, 0.5
        %v963 = vmul.f32 %v952, 0.5
        %v964 = vmul.f32 %v879, 0.5
        %v965 = vmul.f32 %v881, 0.5
        %v966 = vmul.f32 %v956, 0.5
        %v967 = vmul.f32 %v958, 0.5
        %v968 = vtanh.pop %v960
        %v969 = vtanh.pop %v961
        %v970 = vtanh.pop %v962
        %v971 = vtanh.pop %v963
        %v972 = vtanh.pop %v964
        %v973 = vtanh.pop %v965
        %v974 = vtanh.pop %v966
        %v975 = vtanh.pop %v967
        %v976 = vmul.f32 %v968, 0.5
        %v977 = vmul.f32 %v969, 0.5
        %v978 = vmul.f32 %v970, 0.5
        %v979 = vmul.f32 %v971, 0.5
        %v980 = vmul.f32 %v972, 0.5
        %v981 = vmul.f32 %v973, 0.5
        %v982 = vmul.f32 %v974, 0.5
        %v983 = vmul.f32 %v975, 0.5
        %v984 = vadd.f32 %v976, 0.5
        %v985 = vadd.f32 %v977, 0.5
        %v986 = vadd.f32 %v978, 0.5
        %v987 = vadd.f32 %v979, 0.5
        %v988 = vadd.f32 %v980, 0.5
        %v989 = vadd.f32 %v981, 0.5
        %v990 = vadd.f32 %v982, 0.5
        %v991 = vadd.f32 %v983, 0.5
        %992 = vxpose.xlu0.b32.start [1/16] %v984, 128
        %993 = vxpose.xlu0.b32.cont [2/16] %v988, 128
        %994 = vxpose.xlu0.b32.cont [3/16] 0.0, 128
        %995 = vxpose.xlu0.b32.cont [4/16] 0.0, 128
        %996 = vxpose.xlu0.b32.cont [5/16] 0.0, 128
        %997 = vxpose.xlu0.b32.cont [6/16] 0.0, 128
        %998 = vxpose.xlu0.b32.cont [7/16] 0.0, 128
        %999 = vxpose.xlu0.b32.cont [8/16] 0.0, 128
        %1000 = vxpose.xlu0.b32.cont [9/16] 0.0, 128
        %1001 = vxpose.xlu0.b32.cont [10/16] 0.0, 128
        %1002 = vxpose.xlu0.b32.cont [11/16] 0.0, 128
        %1003 = vxpose.xlu0.b32.cont [12/16] 0.0, 128
        %1004 = vxpose.xlu0.b32.cont [13/16] 0.0, 128
        %1005 = vxpose.xlu0.b32.cont [14/16] 0.0, 128
        %1006 = vxpose.xlu0.b32.cont [15/16] 0.0, 128
        %1007 = vxpose.xlu0.b32.end [16/16] 0.0, 128
        %v1008 = vpop.trf.xlu0
        %v1009 = vpop.trf.xlu0
        %v1010 = vpop.trf.xlu0
        %v1011 = vpop.trf.xlu0
        %v1012 = vpop.trf.xlu0
        %v1013 = vpop.trf.xlu0
        %v1014 = vpop.trf.xlu0
        %v1015 = vpop.trf.xlu0
        %v1016 = vpop.trf.xlu0
        %v1017 = vpop.trf.xlu0
        %v1018 = vpop.trf.xlu0
        %v1019 = vpop.trf.xlu0
        %v1020 = vpop.trf.xlu0
        %v1021 = vpop.trf.xlu0
        %v1022 = vpop.trf.xlu0
        %v1023 = vpop.trf.xlu0
        %1024 = vxpose.xlu0.b32.start [1/16] %v985, 128
        %1025 = vxpose.xlu0.b32.cont [2/16] %v989, 128
        %1026 = vxpose.xlu0.b32.cont [3/16] 0.0, 128
        %1027 = vxpose.xlu0.b32.cont [4/16] 0.0, 128
        %1028 = vxpose.xlu0.b32.cont [5/16] 0.0, 128
        %1029 = vxpose.xlu0.b32.cont [6/16] 0.0, 128
        %1030 = vxpose.xlu0.b32.cont [7/16] 0.0, 128
        %1031 = vxpose.xlu0.b32.cont [8/16] 0.0, 128
        %1032 = vxpose.xlu0.b32.cont [9/16] 0.0, 128
        %1033 = vxpose.xlu0.b32.cont [10/16] 0.0, 128
        %1034 = vxpose.xlu0.b32.cont [11/16] 0.0, 128
        %1035 = vxpose.xlu0.b32.cont [12/16] 0.0, 128
        %1036 = vxpose.xlu0.b32.cont [13/16] 0.0, 128
        %1037 = vxpose.xlu0.b32.cont [14/16] 0.0, 128
        %1038 = vxpose.xlu0.b32.cont [15/16] 0.0, 128
        %1039 = vxpose.xlu0.b32.end [16/16] 0.0, 128
        %v1040 = vpop.trf.xlu0
        %v1041 = vpop.trf.xlu0
        %v1042 = vpop.trf.xlu0
        %v1043 = vpop.trf.xlu0
        %v1044 = vpop.trf.xlu0
        %v1045 = vpop.trf.xlu0
        %v1046 = vpop.trf.xlu0
        %v1047 = vpop.trf.xlu0
        %v1048 = vpop.trf.xlu0
        %v1049 = vpop.trf.xlu0
        %v1050 = vpop.trf.xlu0
        %v1051 = vpop.trf.xlu0
        %v1052 = vpop.trf.xlu0
        %v1053 = vpop.trf.xlu0
        %v1054 = vpop.trf.xlu0
        %v1055 = vpop.trf.xlu0
        %1056 = vxpose.xlu0.b32.start [1/16] %v986, 128
        %1057 = vxpose.xlu0.b32.cont [2/16] %v990, 128
        %1058 = vxpose.xlu0.b32.cont [3/16] 0.0, 128
        %1059 = vxpose.xlu0.b32.cont [4/16] 0.0, 128
        %1060 = vxpose.xlu0.b32.cont [5/16] 0.0, 128
        %1061 = vxpose.xlu0.b32.cont [6/16] 0.0, 128
        %1062 = vxpose.xlu0.b32.cont [7/16] 0.0, 128
        %1063 = vxpose.xlu0.b32.cont [8/16] 0.0, 128
        %1064 = vxpose.xlu0.b32.cont [9/16] 0.0, 128
        %1065 = vxpose.xlu0.b32.cont [10/16] 0.0, 128
        %1066 = vxpose.xlu0.b32.cont [11/16] 0.0, 128
        %1067 = vxpose.xlu0.b32.cont [12/16] 0.0, 128
        %1068 = vxpose.xlu0.b32.cont [13/16] 0.0, 128
        %1069 = vxpose.xlu0.b32.cont [14/16] 0.0, 128
        %1070 = vxpose.xlu0.b32.cont [15/16] 0.0, 128
        %1071 = vxpose.xlu0.b32.end [16/16] 0.0, 128
        %v1072 = vpop.trf.xlu0
        %v1073 = vpop.trf.xlu0
        %v1074 = vpop.trf.xlu0
        %v1075 = vpop.trf.xlu0
        %v1076 = vpop.trf.xlu0
        %v1077 = vpop.trf.xlu0
        %v1078 = vpop.trf.xlu0
        %v1079 = vpop.trf.xlu0
        %v1080 = vpop.trf.xlu0
        %v1081 = vpop.trf.xlu0
        %v1082 = vpop.trf.xlu0
        %v1083 = vpop.trf.xlu0
        %v1084 = vpop.trf.xlu0
        %v1085 = vpop.trf.xlu0
        %v1086 = vpop.trf.xlu0
        %v1087 = vpop.trf.xlu0
        %1088 = vxpose.xlu0.b32.start [1/16] %v987, 128
        %1089 = vxpose.xlu0.b32.cont [2/16] %v991, 128
        %1090 = vxpose.xlu0.b32.cont [3/16] 0.0, 128
        %1091 = vxpose.xlu0.b32.cont [4/16] 0.0, 128
        %1092 = vxpose.xlu0.b32.cont [5/16] 0.0, 128
        %1093 = vxpose.xlu0.b32.cont [6/16] 0.0, 128
        %1094 = vxpose.xlu0.b32.cont [7/16] 0.0, 128
        %1095 = vxpose.xlu0.b32.cont [8/16] 0.0, 128
        %1096 = vxpose.xlu0.b32.cont [9/16] 0.0, 128
        %1097 = vxpose.xlu0.b32.cont [10/16] 0.0, 128
        %1098 = vxpose.xlu0.b32.cont [11/16] 0.0, 128
        %1099 = vxpose.xlu0.b32.cont [12/16] 0.0, 128
        %1100 = vxpose.xlu0.b32.cont [13/16] 0.0, 128
        %1101 = vxpose.xlu0.b32.cont [14/16] 0.0, 128
        %1102 = vxpose.xlu0.b32.cont [15/16] 0.0, 128
        %1103 = vxpose.xlu0.b32.end [16/16] 0.0, 128
        %v1104 = vpop.trf.xlu0
        %v1105 = vpop.trf.xlu0
        %v1106 = vpop.trf.xlu0
        %v1107 = vpop.trf.xlu0
        %v1108 = vpop.trf.xlu0
        %v1109 = vpop.trf.xlu0
        %v1110 = vpop.trf.xlu0
        %v1111 = vpop.trf.xlu0
        %v1112 = vpop.trf.xlu0
        %v1113 = vpop.trf.xlu0
        %v1114 = vpop.trf.xlu0
        %v1115 = vpop.trf.xlu0
        %v1116 = vpop.trf.xlu0
        %v1117 = vpop.trf.xlu0
        %v1118 = vpop.trf.xlu0
        %v1119 = vpop.trf.xlu0
        %1120 = vst.msk [vmem:[%s226] sm:$0xff] %vm338, %v1008
        %1121 = vst.msk [vmem:[%s226 + $0x8] sm:$0xff] %vm338, %v1009
        %1122 = vst.msk [vmem:[%s226 + $0x10] sm:$0xff] %vm338, %v1010
        %1123 = vst.msk [vmem:[%s226 + $0x18] sm:$0xff] %vm338, %v1011
        %1124 = vst.msk [vmem:[%s226 + $0x20] sm:$0xff] %vm338, %v1012
        %1125 = vst.msk [vmem:[%s226 + $0x28] sm:$0xff] %vm338, %v1013
        %1126 = vst.msk [vmem:[%s226 + $0x30] sm:$0xff] %vm338, %v1014
        %1127 = vst.msk [vmem:[%s226 + $0x38] sm:$0xff] %vm338, %v1015
        %1128 = vst.msk [vmem:[%s226 + $0x40] sm:$0xff] %vm338, %v1016
        %1129 = vst.msk [vmem:[%s226 + $0x48] sm:$0xff] %vm338, %v1017
        %1130 = vst.msk [vmem:[%s226 + $0x50] sm:$0xff] %vm338, %v1018
        %1131 = vst.msk [vmem:[%s226 + $0x58] sm:$0xff] %vm338, %v1019
        %1132 = vst.msk [vmem:[%s226 + $0x60] sm:$0xff] %vm338, %v1020
        %1133 = vst.msk [vmem:[%s226 + $0x68] sm:$0xff] %vm338, %v1021
        %1134 = vst.msk [vmem:[%s226 + $0x70] sm:$0xff] %vm338, %v1022
        %1135 = vst.msk [vmem:[%s226 + $0x78] sm:$0xff] %vm338, %v1023
        %1136 = vst.msk [vmem:[%s226 + $0x80] sm:$0xff] %vm338, %v1040
        %1137 = vst.msk [vmem:[%s226 + $0x88] sm:$0xff] %vm338, %v1041
        %1138 = vst.msk [vmem:[%s226 + $0x90] sm:$0xff] %vm338, %v1042
        %1139 = vst.msk [vmem:[%s226 + $0x98] sm:$0xff] %vm338, %v1043
        %1140 = vst.msk [vmem:[%s226 + $0xa0] sm:$0xff] %vm338, %v1044
        %1141 = vst.msk [vmem:[%s226 + $0xa8] sm:$0xff] %vm338, %v1045
        %1142 = vst.msk [vmem:[%s226 + $0xb0] sm:$0xff] %vm338, %v1046
        %1143 = vst.msk [vmem:[%s226 + $0xb8] sm:$0xff] %vm338, %v1047
        %1144 = vst.msk [vmem:[%s226 + $0xc0] sm:$0xff] %vm338, %v1048
        %1145 = vst.msk [vmem:[%s226 + $0xc8] sm:$0xff] %vm338, %v1049
        %1146 = vst.msk [vmem:[%s226 + $0xd0] sm:$0xff] %vm338, %v1050
        %1147 = vst.msk [vmem:[%s226 + $0xd8] sm:$0xff] %vm338, %v1051
        %1148 = vst.msk [vmem:[%s226 + $0xe0] sm:$0xff] %vm338, %v1052
        %1149 = vst.msk [vmem:[%s226 + $0xe8] sm:$0xff] %vm338, %v1053
        %1150 = vst.msk [vmem:[%s226 + $0xf0] sm:$0xff] %vm338, %v1054
        %1151 = vst.msk [vmem:[%s226 + $0xf8] sm:$0xff] %vm338, %v1055
        %1152 = vst.msk [vmem:[%s226 + $0x100] sm:$0xff] %vm338, %v1072
        %1153 = vst.msk [vmem:[%s226 + $0x108] sm:$0xff] %vm338, %v1073
        %1154 = vst.msk [vmem:[%s226 + $0x110] sm:$0xff] %vm338, %v1074
        %1155 = vst.msk [vmem:[%s226 + $0x118] sm:$0xff] %vm338, %v1075
        %1156 = vst.msk [vmem:[%s226 + $0x120] sm:$0xff] %vm338, %v1076
        %1157 = vst.msk [vmem:[%s226 + $0x128] sm:$0xff] %vm338, %v1077
        %1158 = vst.msk [vmem:[%s226 + $0x130] sm:$0xff] %vm338, %v1078
        %1159 = vst.msk [vmem:[%s226 + $0x138] sm:$0xff] %vm338, %v1079
        %1160 = vst.msk [vmem:[%s226 + $0x140] sm:$0xff] %vm338, %v1080
        %1161 = vst.msk [vmem:[%s226 + $0x148] sm:$0xff] %vm338, %v1081
        %1162 = vst.msk [vmem:[%s226 + $0x150] sm:$0xff] %vm338, %v1082
        %1163 = vst.msk [vmem:[%s226 + $0x158] sm:$0xff] %vm338, %v1083
        %1164 = vst.msk [vmem:[%s226 + $0x160] sm:$0xff] %vm338, %v1084
        %1165 = vst.msk [vmem:[%s226 + $0x168] sm:$0xff] %vm338, %v1085
        %1166 = vst.msk [vmem:[%s226 + $0x170] sm:$0xff] %vm338, %v1086
        %1167 = vst.msk [vmem:[%s226 + $0x178] sm:$0xff] %vm338, %v1087
        %1168 = vst.msk [vmem:[%s226 + $0x180] sm:$0xff] %vm338, %v1104
        %1169 = vst.msk [vmem:[%s226 + $0x188] sm:$0xff] %vm338, %v1105
        %1170 = vst.msk [vmem:[%s226 + $0x190] sm:$0xff] %vm338, %v1106
        %1171 = vst.msk [vmem:[%s226 + $0x198] sm:$0xff] %vm338, %v1107
        %1172 = vst.msk [vmem:[%s226 + $0x1a0] sm:$0xff] %vm338, %v1108
        %1173 = vst.msk [vmem:[%s226 + $0x1a8] sm:$0xff] %vm338, %v1109
        %1174 = vst.msk [vmem:[%s226 + $0x1b0] sm:$0xff] %vm338, %v1110
        %1175 = vst.msk [vmem:[%s226 + $0x1b8] sm:$0xff] %vm338, %v1111
        %1176 = vst.msk [vmem:[%s226 + $0x1c0] sm:$0xff] %vm338, %v1112
        %1177 = vst.msk [vmem:[%s226 + $0x1c8] sm:$0xff] %vm338, %v1113
        %1178 = vst.msk [vmem:[%s226 + $0x1d0] sm:$0xff] %vm338, %v1114
        %1179 = vst.msk [vmem:[%s226 + $0x1d8] sm:$0xff] %vm338, %v1115
        %1180 = vst.msk [vmem:[%s226 + $0x1e0] sm:$0xff] %vm338, %v1116
        %1181 = vst.msk [vmem:[%s226 + $0x1e8] sm:$0xff] %vm338, %v1117
        %1182 = vst.msk [vmem:[%s226 + $0x1f0] sm:$0xff] %vm338, %v1118
        %1183 = vst.msk [vmem:[%s226 + $0x1f8] sm:$0xff] %vm338, %v1119
        %s1184 = sand.u32 %s134, 1
        %s1185 = sand.u32 %s134, 1
        %s1186 = smul.addr %s1185, 512
        %s1187 = scalar_lea.vmem [#allocation2], %s1186
        // Predicated region
        $region41: #{tpu_custom_call.1} parent=39 // pred_check
          %p1188 = pneg %p144
        $region42: #{tpu_custom_call.1} parent=39 // pred_check_branch
          %1190 = sbr.rel (%p1188) target = $region44
        $region43: #{tpu_custom_call.1} parent=39 // pred_region
          %s1191 = smul.u32 64, %s16
          %s1192 = ssub.s32 75, %s1191
          %p1193 = scmp.lt.s32.totalorder %s1192, 64
          %s1194 = scalar_select %p1193, %s1192, 64
          %s1195 = smul.u32 128, %s1194
          %p1196 = scmp.ne.s32.totalorder 0, %s1195
          %s1197 = smul.addr %s1191, 8
          %s1198 = scalar_lea.vmem %s5, %s1197
          // Predicated region
          $region45: #{tpu_custom_call.1} parent=43 // pred_check
            %p1199 = pneg %p1196
          $region46: #{tpu_custom_call.1} parent=43 // pred_check_branch
            %1201 = sbr.rel (%p1199) target = $region48
          $region47: #{tpu_custom_call.1} parent=43 // pred_region
            // Predicated region
            $region49: #{tpu_custom_call.1} parent=47 // pred_check
              _
            $region50: #{tpu_custom_call.1} parent=47 // pred_check_branch
              %1203 = sbr.rel (0) target = $region52
            $region51: #{tpu_custom_call.1} parent=47 // pred_region
              // Predicated region
              $region71: #{tpu_custom_call.1} parent=51 // pred_check
                _
              $region72: #{tpu_custom_call.1} parent=51 // pred_check_branch
                %1378 = sbr.rel (0) target = $region74
              $region73: #{tpu_custom_call.1} parent=51 // pred_region
                %s1379 = sshrl.u32 %s1194, 6
                // While loop
                $region75: #{tpu_custom_call.1} parent=73 // loop_pre_header
                  _
                $region76: #{tpu_custom_call.1} parent=73 // loop_header
                  %s1381 = sphi 0, %s1383
                  %p1382 = scmp.ge.s32.totalorder %s1381, %s1379
                  %s1386 = sphi 0, %s1519
                  %s1387 = sphi %s1187, %s1522
                  %s1388 = sphi %s1198, %s1523
                $region77: #{tpu_custom_call.1} parent=73 // loop_header_branch
                  %1385 = sbr.rel (%p1382) target = $region81
                $region78: #{tpu_custom_call.1} parent=73 // loop_body
                  %v1389 = vld [vmem:[%s1387] sm:$0xff]
                  %1390 = vst [vmem:[%s1388] sm:$0xff] %v1389
                  %v1391 = vld [vmem:[%s1387 + $0x8] sm:$0xff]
                  %1392 = vst [vmem:[%s1388 + $0x8] sm:$0xff] %v1391
                  %v1393 = vld [vmem:[%s1387 + $0x10] sm:$0xff]
                  %1394 = vst [vmem:[%s1388 + $0x10] sm:$0xff] %v1393
                  %v1395 = vld [vmem:[%s1387 + $0x18] sm:$0xff]
                  %1396 = vst [vmem:[%s1388 + $0x18] sm:$0xff] %v1395
                  %v1397 = vld [vmem:[%s1387 + $0x20] sm:$0xff]
                  %1398 = vst [vmem:[%s1388 + $0x20] sm:$0xff] %v1397
                  %v1399 = vld [vmem:[%s1387 + $0x28] sm:$0xff]
                  %1400 = vst [vmem:[%s1388 + $0x28] sm:$0xff] %v1399
                  %v1401 = vld [vmem:[%s1387 + $0x30] sm:$0xff]
                  %1402 = vst [vmem:[%s1388 + $0x30] sm:$0xff] %v1401
                  %v1403 = vld [vmem:[%s1387 + $0x38] sm:$0xff]
                  %1404 = vst [vmem:[%s1388 + $0x38] sm:$0xff] %v1403
                  %v1405 = vld [vmem:[%s1387 + $0x40] sm:$0xff]
                  %1406 = vst [vmem:[%s1388 + $0x40] sm:$0xff] %v1405
                  %v1407 = vld [vmem:[%s1387 + $0x48] sm:$0xff]
                  %1408 = vst [vmem:[%s1388 + $0x48] sm:$0xff] %v1407
                  %v1409 = vld [vmem:[%s1387 + $0x50] sm:$0xff]
                  %1410 = vst [vmem:[%s1388 + $0x50] sm:$0xff] %v1409
                  %v1411 = vld [vmem:[%s1387 + $0x58] sm:$0xff]
                  %1412 = vst [vmem:[%s1388 + $0x58] sm:$0xff] %v1411
                  %v1413 = vld [vmem:[%s1387 + $0x60] sm:$0xff]
                  %1414 = vst [vmem:[%s1388 + $0x60] sm:$0xff] %v1413
                  %v1415 = vld [vmem:[%s1387 + $0x68] sm:$0xff]
                  %1416 = vst [vmem:[%s1388 + $0x68] sm:$0xff] %v1415
                  %v1417 = vld [vmem:[%s1387 + $0x70] sm:$0xff]
                  %1418 = vst [vmem:[%s1388 + $0x70] sm:$0xff] %v1417
                  %v1419 = vld [vmem:[%s1387 + $0x78] sm:$0xff]
                  %1420 = vst [vmem:[%s1388 + $0x78] sm:$0xff] %v1419
                  %v1421 = vld [vmem:[%s1387 + $0x80] sm:$0xff]
                  %1422 = vst [vmem:[%s1388 + $0x80] sm:$0xff] %v1421
                  %v1423 = vld [vmem:[%s1387 + $0x88] sm:$0xff]
                  %1424 = vst [vmem:[%s1388 + $0x88] sm:$0xff] %v1423
                  %v1425 = vld [vmem:[%s1387 + $0x90] sm:$0xff]
                  %1426 = vst [vmem:[%s1388 + $0x90] sm:$0xff] %v1425
                  %v1427 = vld [vmem:[%s1387 + $0x98] sm:$0xff]
                  %1428 = vst [vmem:[%s1388 + $0x98] sm:$0xff] %v1427
                  %v1429 = vld [vmem:[%s1387 + $0xa0] sm:$0xff]
                  %1430 = vst [vmem:[%s1388 + $0xa0] sm:$0xff] %v1429
                  %v1431 = vld [vmem:[%s1387 + $0xa8] sm:$0xff]
                  %1432 = vst [vmem:[%s1388 + $0xa8] sm:$0xff] %v1431
                  %v1433 = vld [vmem:[%s1387 + $0xb0] sm:$0xff]
                  %1434 = vst [vmem:[%s1388 + $0xb0] sm:$0xff] %v1433
                  %v1435 = vld [vmem:[%s1387 + $0xb8] sm:$0xff]
                  %1436 = vst [vmem:[%s1388 + $0xb8] sm:$0xff] %v1435
                  %v1437 = vld [vmem:[%s1387 + $0xc0] sm:$0xff]
                  %1438 = vst [vmem:[%s1388 + $0xc0] sm:$0xff] %v1437
                  %v1439 = vld [vmem:[%s1387 + $0xc8] sm:$0xff]
                  %1440 = vst [vmem:[%s1388 + $0xc8] sm:$0xff] %v1439
                  %v1441 = vld [vmem:[%s1387 + $0xd0] sm:$0xff]
                  %1442 = vst [vmem:[%s1388 + $0xd0] sm:$0xff] %v1441
                  %v1443 = vld [vmem:[%s1387 + $0xd8] sm:$0xff]
                  %1444 = vst [vmem:[%s1388 + $0xd8] sm:$0xff] %v1443
                  %v1445 = vld [vmem:[%s1387 + $0xe0] sm:$0xff]
                  %1446 = vst [vmem:[%s1388 + $0xe0] sm:$0xff] %v1445
                  %v1447 = vld [vmem:[%s1387 + $0xe8] sm:$0xff]
                  %1448 = vst [vmem:[%s1388 + $0xe8] sm:$0xff] %v1447
                  %v1449 = vld [vmem:[%s1387 + $0xf0] sm:$0xff]
                  %1450 = vst [vmem:[%s1388 + $0xf0] sm:$0xff] %v1449
                  %v1451 = vld [vmem:[%s1387 + $0xf8] sm:$0xff]
                  %1452 = vst [vmem:[%s1388 + $0xf8] sm:$0xff] %v1451
                  %v1453 = vld [vmem:[%s1387 + $0x100] sm:$0xff]
                  %1454 = vst [vmem:[%s1388 + $0x100] sm:$0xff] %v1453
                  %v1455 = vld [vmem:[%s1387 + $0x108] sm:$0xff]
                  %1456 = vst [vmem:[%s1388 + $0x108] sm:$0xff] %v1455
                  %v1457 = vld [vmem:[%s1387 + $0x110] sm:$0xff]
                  %1458 = vst [vmem:[%s1388 + $0x110] sm:$0xff] %v1457
                  %v1459 = vld [vmem:[%s1387 + $0x118] sm:$0xff]
                  %1460 = vst [vmem:[%s1388 + $0x118] sm:$0xff] %v1459
                  %v1461 = vld [vmem:[%s1387 + $0x120] sm:$0xff]
                  %1462 = vst [vmem:[%s1388 + $0x120] sm:$0xff] %v1461
                  %v1463 = vld [vmem:[%s1387 + $0x128] sm:$0xff]
                  %1464 = vst [vmem:[%s1388 + $0x128] sm:$0xff] %v1463
                  %v1465 = vld [vmem:[%s1387 + $0x130] sm:$0xff]
                  %1466 = vst [vmem:[%s1388 + $0x130] sm:$0xff] %v1465
                  %v1467 = vld [vmem:[%s1387 + $0x138] sm:$0xff]
                  %1468 = vst [vmem:[%s1388 + $0x138] sm:$0xff] %v1467
                  %v1469 = vld [vmem:[%s1387 + $0x140] sm:$0xff]
                  %1470 = vst [vmem:[%s1388 + $0x140] sm:$0xff] %v1469
                  %v1471 = vld [vmem:[%s1387 + $0x148] sm:$0xff]
                  %1472 = vst [vmem:[%s1388 + $0x148] sm:$0xff] %v1471
                  %v1473 = vld [vmem:[%s1387 + $0x150] sm:$0xff]
                  %1474 = vst [vmem:[%s1388 + $0x150] sm:$0xff] %v1473
                  %v1475 = vld [vmem:[%s1387 + $0x158] sm:$0xff]
                  %1476 = vst [vmem:[%s1388 + $0x158] sm:$0xff] %v1475
                  %v1477 = vld [vmem:[%s1387 + $0x160] sm:$0xff]
                  %1478 = vst [vmem:[%s1388 + $0x160] sm:$0xff] %v1477
                  %v1479 = vld [vmem:[%s1387 + $0x168] sm:$0xff]
                  %1480 = vst [vmem:[%s1388 + $0x168] sm:$0xff] %v1479
                  %v1481 = vld [vmem:[%s1387 + $0x170] sm:$0xff]
                  %1482 = vst [vmem:[%s1388 + $0x170] sm:$0xff] %v1481
                  %v1483 = vld [vmem:[%s1387 + $0x178] sm:$0xff]
                  %1484 = vst [vmem:[%s1388 + $0x178] sm:$0xff] %v1483
                  %v1485 = vld [vmem:[%s1387 + $0x180] sm:$0xff]
                  %1486 = vst [vmem:[%s1388 + $0x180] sm:$0xff] %v1485
                  %v1487 = vld [vmem:[%s1387 + $0x188] sm:$0xff]
                  %1488 = vst [vmem:[%s1388 + $0x188] sm:$0xff] %v1487
                  %v1489 = vld [vmem:[%s1387 + $0x190] sm:$0xff]
                  %1490 = vst [vmem:[%s1388 + $0x190] sm:$0xff] %v1489
                  %v1491 = vld [vmem:[%s1387 + $0x198] sm:$0xff]
                  %1492 = vst [vmem:[%s1388 + $0x198] sm:$0xff] %v1491
                  %v1493 = vld [vmem:[%s1387 + $0x1a0] sm:$0xff]
                  %1494 = vst [vmem:[%s1388 + $0x1a0] sm:$0xff] %v1493
                  %v1495 = vld [vmem:[%s1387 + $0x1a8] sm:$0xff]
                  %1496 = vst [vmem:[%s1388 + $0x1a8] sm:$0xff] %v1495
                  %v1497 = vld [vmem:[%s1387 + $0x1b0] sm:$0xff]
                  %1498 = vst [vmem:[%s1388 + $0x1b0] sm:$0xff] %v1497
                  %v1499 = vld [vmem:[%s1387 + $0x1b8] sm:$0xff]
                  %1500 = vst [vmem:[%s1388 + $0x1b8] sm:$0xff] %v1499
                  %v1501 = vld [vmem:[%s1387 + $0x1c0] sm:$0xff]
                  %1502 = vst [vmem:[%s1388 + $0x1c0] sm:$0xff] %v1501
                  %v1503 = vld [vmem:[%s1387 + $0x1c8] sm:$0xff]
                  %1504 = vst [vmem:[%s1388 + $0x1c8] sm:$0xff] %v1503
                  %v1505 = vld [vmem:[%s1387 + $0x1d0] sm:$0xff]
                  %1506 = vst [vmem:[%s1388 + $0x1d0] sm:$0xff] %v1505
                  %v1507 = vld [vmem:[%s1387 + $0x1d8] sm:$0xff]
                  %1508 = vst [vmem:[%s1388 + $0x1d8] sm:$0xff] %v1507
                  %v1509 = vld [vmem:[%s1387 + $0x1e0] sm:$0xff]
                  %1510 = vst [vmem:[%s1388 + $0x1e0] sm:$0xff] %v1509
                  %v1511 = vld [vmem:[%s1387 + $0x1e8] sm:$0xff]
                  %1512 = vst [vmem:[%s1388 + $0x1e8] sm:$0xff] %v1511
                  %v1513 = vld [vmem:[%s1387 + $0x1f0] sm:$0xff]
                  %1514 = vst [vmem:[%s1388 + $0x1f0] sm:$0xff] %v1513
                  %v1515 = vld [vmem:[%s1387 + $0x1f8] sm:$0xff]
                  %1516 = vst [vmem:[%s1388 + $0x1f8] sm:$0xff] %v1515
                  %s1517 = sadd.s32 1, %s1386
                  %p1518 = scmp.ge.s32.totalorder %s1517, %s1379
                  %s1519 = scalar_select %p1518, 0, %s1517
                  %s1520 = smul.u32 %s1519, 512
                  %s1521 = smul.u32 %s1519, 512
                  %s1522 = scalar_lea.vmem %s1187, %s1520 [#allocation2]
                  %s1523 = scalar_lea.vmem %s1198, %s1521
                $region79: #{tpu_custom_call.1} parent=73 // loop_footer
                  %s1383 = sadd.s32 %s1381, 1
                $region80: #{tpu_custom_call.1} parent=73 // loop_footer_branch
                  %1380 = sbr.rel target = $region76
                $region81: #{tpu_custom_call.1} parent=73 // loop_exit
                  _
                %s1524 = sshrl.u32 %s1194, 6
                %s1525 = sand.u32 %s1194, 63
                %s1526 = smul.u32 %s1524, 64
                %s1527 = smul.u32 8, %s1526
                %s1528 = scalar_lea.vmem %s1187, %s1527 [#allocation2]
                %s1529 = smul.u32 8, %s1526
                %s1530 = scalar_lea.vmem %s1198, %s1529
                // While loop
                $region82: #{tpu_custom_call.1} parent=73 // loop_pre_header
                  _
                $region83: #{tpu_custom_call.1} parent=73 // loop_header
                  %s1532 = sphi 0, %s1534
                  %p1533 = scmp.ge.s32.totalorder %s1532, %s1525
                  %s1537 = sphi 0, %s1544
                  %s1538 = sphi %s1528, %s1547
                  %s1539 = sphi %s1530, %s1548
                $region84: #{tpu_custom_call.1} parent=73 // loop_header_branch
                  %1536 = sbr.rel (%p1533) target = $region88
                $region85: #{tpu_custom_call.1} parent=73 // loop_body
                  %v1540 = vld [vmem:[%s1538] sm:$0xff]
                  %1541 = vst [vmem:[%s1539] sm:$0xff] %v1540
                  %s1542 = sadd.s32 1, %s1537
                  %p1543 = scmp.ge.s32.totalorder %s1542, %s1525
                  %s1544 = scalar_select %p1543, 0, %s1542
                  %s1545 = smul.u32 %s1544, 8
                  %s1546 = smul.u32 %s1544, 8
                  %s1547 = scalar_lea.vmem %s1528, %s1545 [#allocation2]
                  %s1548 = scalar_lea.vmem %s1530, %s1546
                $region86: #{tpu_custom_call.1} parent=73 // loop_footer
                  %s1534 = sadd.s32 %s1532, 1
                $region87: #{tpu_custom_call.1} parent=73 // loop_footer_branch
                  %1531 = sbr.rel target = $region83
                $region88: #{tpu_custom_call.1} parent=73 // loop_exit
                  _
              $region74: #{tpu_custom_call.1} parent=51 // pred_fallthru
                _
              // Predicated region
              $region89: #{tpu_custom_call.1} parent=51 // pred_check
                _
              $region90: #{tpu_custom_call.1} parent=51 // pred_check_branch
                %1550 = sbr.rel target = $region92
              $region91: #{tpu_custom_call.1} parent=51 // pred_region
                _
              $region92: #{tpu_custom_call.1} parent=51 // pred_fallthru
                _
            $region52: #{tpu_custom_call.1} parent=47 // pred_fallthru
              _
            // Predicated region
            $region53: #{tpu_custom_call.1} parent=47 // pred_check
              _
            $region54: #{tpu_custom_call.1} parent=47 // pred_check_branch
              %1205 = sbr.rel target = $region56
            $region55: #{tpu_custom_call.1} parent=47 // pred_region
              %s1207 = sshrl.u32 %s1194, 6
              // While loop
              $region57: #{tpu_custom_call.1} parent=55 // loop_pre_header
                _
              $region58: #{tpu_custom_call.1} parent=55 // loop_header
                %s1209 = sphi 0, %s1211
                %p1210 = scmp.ge.s32.totalorder %s1209, %s1207
                %s1214 = sphi 0, %s1347
                %s1215 = sphi %s1187, %s1350
                %s1216 = sphi %s1198, %s1351
              $region59: #{tpu_custom_call.1} parent=55 // loop_header_branch
                %1213 = sbr.rel (%p1210) target = $region63
              $region60: #{tpu_custom_call.1} parent=55 // loop_body
                %v1217 = vld [vmem:[%s1215] sm:$0xff]
                %1218 = vst [vmem:[%s1216] sm:$0xff] %v1217
                %v1219 = vld [vmem:[%s1215 + $0x8] sm:$0xff]
                %1220 = vst [vmem:[%s1216 + $0x8] sm:$0xff] %v1219
                %v1221 = vld [vmem:[%s1215 + $0x10] sm:$0xff]
                %1222 = vst [vmem:[%s1216 + $0x10] sm:$0xff] %v1221
                %v1223 = vld [vmem:[%s1215 + $0x18] sm:$0xff]
                %1224 = vst [vmem:[%s1216 + $0x18] sm:$0xff] %v1223
                %v1225 = vld [vmem:[%s1215 + $0x20] sm:$0xff]
                %1226 = vst [vmem:[%s1216 + $0x20] sm:$0xff] %v1225
                %v1227 = vld [vmem:[%s1215 + $0x28] sm:$0xff]
                %1228 = vst [vmem:[%s1216 + $0x28] sm:$0xff] %v1227
                %v1229 = vld [vmem:[%s1215 + $0x30] sm:$0xff]
                %1230 = vst [vmem:[%s1216 + $0x30] sm:$0xff] %v1229
                %v1231 = vld [vmem:[%s1215 + $0x38] sm:$0xff]
                %1232 = vst [vmem:[%s1216 + $0x38] sm:$0xff] %v1231
                %v1233 = vld [vmem:[%s1215 + $0x40] sm:$0xff]
                %1234 = vst [vmem:[%s1216 + $0x40] sm:$0xff] %v1233
                %v1235 = vld [vmem:[%s1215 + $0x48] sm:$0xff]
                %1236 = vst [vmem:[%s1216 + $0x48] sm:$0xff] %v1235
                %v1237 = vld [vmem:[%s1215 + $0x50] sm:$0xff]
                %1238 = vst [vmem:[%s1216 + $0x50] sm:$0xff] %v1237
                %v1239 = vld [vmem:[%s1215 + $0x58] sm:$0xff]
                %1240 = vst [vmem:[%s1216 + $0x58] sm:$0xff] %v1239
                %v1241 = vld [vmem:[%s1215 + $0x60] sm:$0xff]
                %1242 = vst [vmem:[%s1216 + $0x60] sm:$0xff] %v1241
                %v1243 = vld [vmem:[%s1215 + $0x68] sm:$0xff]
                %1244 = vst [vmem:[%s1216 + $0x68] sm:$0xff] %v1243
                %v1245 = vld [vmem:[%s1215 + $0x70] sm:$0xff]
                %1246 = vst [vmem:[%s1216 + $0x70] sm:$0xff] %v1245
                %v1247 = vld [vmem:[%s1215 + $0x78] sm:$0xff]
                %1248 = vst [vmem:[%s1216 + $0x78] sm:$0xff] %v1247
                %v1249 = vld [vmem:[%s1215 + $0x80] sm:$0xff]
                %1250 = vst [vmem:[%s1216 + $0x80] sm:$0xff] %v1249
                %v1251 = vld [vmem:[%s1215 + $0x88] sm:$0xff]
                %1252 = vst [vmem:[%s1216 + $0x88] sm:$0xff] %v1251
                %v1253 = vld [vmem:[%s1215 + $0x90] sm:$0xff]
                %1254 = vst [vmem:[%s1216 + $0x90] sm:$0xff] %v1253
                %v1255 = vld [vmem:[%s1215 + $0x98] sm:$0xff]
                %1256 = vst [vmem:[%s1216 + $0x98] sm:$0xff] %v1255
                %v1257 = vld [vmem:[%s1215 + $0xa0] sm:$0xff]
                %1258 = vst [vmem:[%s1216 + $0xa0] sm:$0xff] %v1257
                %v1259 = vld [vmem:[%s1215 + $0xa8] sm:$0xff]
                %1260 = vst [vmem:[%s1216 + $0xa8] sm:$0xff] %v1259
                %v1261 = vld [vmem:[%s1215 + $0xb0] sm:$0xff]
                %1262 = vst [vmem:[%s1216 + $0xb0] sm:$0xff] %v1261
                %v1263 = vld [vmem:[%s1215 + $0xb8] sm:$0xff]
                %1264 = vst [vmem:[%s1216 + $0xb8] sm:$0xff] %v1263
                %v1265 = vld [vmem:[%s1215 + $0xc0] sm:$0xff]
                %1266 = vst [vmem:[%s1216 + $0xc0] sm:$0xff] %v1265
                %v1267 = vld [vmem:[%s1215 + $0xc8] sm:$0xff]
                %1268 = vst [vmem:[%s1216 + $0xc8] sm:$0xff] %v1267
                %v1269 = vld [vmem:[%s1215 + $0xd0] sm:$0xff]
                %1270 = vst [vmem:[%s1216 + $0xd0] sm:$0xff] %v1269
                %v1271 = vld [vmem:[%s1215 + $0xd8] sm:$0xff]
                %1272 = vst [vmem:[%s1216 + $0xd8] sm:$0xff] %v1271
                %v1273 = vld [vmem:[%s1215 + $0xe0] sm:$0xff]
                %1274 = vst [vmem:[%s1216 + $0xe0] sm:$0xff] %v1273
                %v1275 = vld [vmem:[%s1215 + $0xe8] sm:$0xff]
                %1276 = vst [vmem:[%s1216 + $0xe8] sm:$0xff] %v1275
                %v1277 = vld [vmem:[%s1215 + $0xf0] sm:$0xff]
                %1278 = vst [vmem:[%s1216 + $0xf0] sm:$0xff] %v1277
                %v1279 = vld [vmem:[%s1215 + $0xf8] sm:$0xff]
                %1280 = vst [vmem:[%s1216 + $0xf8] sm:$0xff] %v1279
                %v1281 = vld [vmem:[%s1215 + $0x100] sm:$0xff]
                %1282 = vst [vmem:[%s1216 + $0x100] sm:$0xff] %v1281
                %v1283 = vld [vmem:[%s1215 + $0x108] sm:$0xff]
                %1284 = vst [vmem:[%s1216 + $0x108] sm:$0xff] %v1283
                %v1285 = vld [vmem:[%s1215 + $0x110] sm:$0xff]
                %1286 = vst [vmem:[%s1216 + $0x110] sm:$0xff] %v1285
                %v1287 = vld [vmem:[%s1215 + $0x118] sm:$0xff]
                %1288 = vst [vmem:[%s1216 + $0x118] sm:$0xff] %v1287
                %v1289 = vld [vmem:[%s1215 + $0x120] sm:$0xff]
                %1290 = vst [vmem:[%s1216 + $0x120] sm:$0xff] %v1289
                %v1291 = vld [vmem:[%s1215 + $0x128] sm:$0xff]
                %1292 = vst [vmem:[%s1216 + $0x128] sm:$0xff] %v1291
                %v1293 = vld [vmem:[%s1215 + $0x130] sm:$0xff]
                %1294 = vst [vmem:[%s1216 + $0x130] sm:$0xff] %v1293
                %v1295 = vld [vmem:[%s1215 + $0x138] sm:$0xff]
                %1296 = vst [vmem:[%s1216 + $0x138] sm:$0xff] %v1295
                %v1297 = vld [vmem:[%s1215 + $0x140] sm:$0xff]
                %1298 = vst [vmem:[%s1216 + $0x140] sm:$0xff] %v1297
                %v1299 = vld [vmem:[%s1215 + $0x148] sm:$0xff]
                %1300 = vst [vmem:[%s1216 + $0x148] sm:$0xff] %v1299
                %v1301 = vld [vmem:[%s1215 + $0x150] sm:$0xff]
                %1302 = vst [vmem:[%s1216 + $0x150] sm:$0xff] %v1301
                %v1303 = vld [vmem:[%s1215 + $0x158] sm:$0xff]
                %1304 = vst [vmem:[%s1216 + $0x158] sm:$0xff] %v1303
                %v1305 = vld [vmem:[%s1215 + $0x160] sm:$0xff]
                %1306 = vst [vmem:[%s1216 + $0x160] sm:$0xff] %v1305
                %v1307 = vld [vmem:[%s1215 + $0x168] sm:$0xff]
                %1308 = vst [vmem:[%s1216 + $0x168] sm:$0xff] %v1307
                %v1309 = vld [vmem:[%s1215 + $0x170] sm:$0xff]
                %1310 = vst [vmem:[%s1216 + $0x170] sm:$0xff] %v1309
                %v1311 = vld [vmem:[%s1215 + $0x178] sm:$0xff]
                %1312 = vst [vmem:[%s1216 + $0x178] sm:$0xff] %v1311
                %v1313 = vld [vmem:[%s1215 + $0x180] sm:$0xff]
                %1314 = vst [vmem:[%s1216 + $0x180] sm:$0xff] %v1313
                %v1315 = vld [vmem:[%s1215 + $0x188] sm:$0xff]
                %1316 = vst [vmem:[%s1216 + $0x188] sm:$0xff] %v1315
                %v1317 = vld [vmem:[%s1215 + $0x190] sm:$0xff]
                %1318 = vst [vmem:[%s1216 + $0x190] sm:$0xff] %v1317
                %v1319 = vld [vmem:[%s1215 + $0x198] sm:$0xff]
                %1320 = vst [vmem:[%s1216 + $0x198] sm:$0xff] %v1319
                %v1321 = vld [vmem:[%s1215 + $0x1a0] sm:$0xff]
                %1322 = vst [vmem:[%s1216 + $0x1a0] sm:$0xff] %v1321
                %v1323 = vld [vmem:[%s1215 + $0x1a8] sm:$0xff]
                %1324 = vst [vmem:[%s1216 + $0x1a8] sm:$0xff] %v1323
                %v1325 = vld [vmem:[%s1215 + $0x1b0] sm:$0xff]
                %1326 = vst [vmem:[%s1216 + $0x1b0] sm:$0xff] %v1325
                %v1327 = vld [vmem:[%s1215 + $0x1b8] sm:$0xff]
                %1328 = vst [vmem:[%s1216 + $0x1b8] sm:$0xff] %v1327
                %v1329 = vld [vmem:[%s1215 + $0x1c0] sm:$0xff]
                %1330 = vst [vmem:[%s1216 + $0x1c0] sm:$0xff] %v1329
                %v1331 = vld [vmem:[%s1215 + $0x1c8] sm:$0xff]
                %1332 = vst [vmem:[%s1216 + $0x1c8] sm:$0xff] %v1331
                %v1333 = vld [vmem:[%s1215 + $0x1d0] sm:$0xff]
                %1334 = vst [vmem:[%s1216 + $0x1d0] sm:$0xff] %v1333
                %v1335 = vld [vmem:[%s1215 + $0x1d8] sm:$0xff]
                %1336 = vst [vmem:[%s1216 + $0x1d8] sm:$0xff] %v1335
                %v1337 = vld [vmem:[%s1215 + $0x1e0] sm:$0xff]
                %1338 = vst [vmem:[%s1216 + $0x1e0] sm:$0xff] %v1337
                %v1339 = vld [vmem:[%s1215 + $0x1e8] sm:$0xff]
                %1340 = vst [vmem:[%s1216 + $0x1e8] sm:$0xff] %v1339
                %v1341 = vld [vmem:[%s1215 + $0x1f0] sm:$0xff]
                %1342 = vst [vmem:[%s1216 + $0x1f0] sm:$0xff] %v1341
                %v1343 = vld [vmem:[%s1215 + $0x1f8] sm:$0xff]
                %1344 = vst [vmem:[%s1216 + $0x1f8] sm:$0xff] %v1343
                %s1345 = sadd.s32 1, %s1214
                %p1346 = scmp.ge.s32.totalorder %s1345, %s1207
                %s1347 = scalar_select %p1346, 0, %s1345
                %s1348 = smul.u32 %s1347, 512
                %s1349 = smul.u32 %s1347, 512
                %s1350 = scalar_lea.vmem %s1187, %s1348 [#allocation2]
                %s1351 = scalar_lea.vmem %s1198, %s1349
              $region61: #{tpu_custom_call.1} parent=55 // loop_footer
                %s1211 = sadd.s32 %s1209, 1
              $region62: #{tpu_custom_call.1} parent=55 // loop_footer_branch
                %1208 = sbr.rel target = $region58
              $region63: #{tpu_custom_call.1} parent=55 // loop_exit
                _
              %s1352 = sshrl.u32 %s1194, 6
              %s1353 = sand.u32 %s1194, 63
              %s1354 = smul.u32 %s1352, 64
              %s1355 = smul.u32 8, %s1354
              %s1356 = scalar_lea.vmem %s1187, %s1355 [#allocation2]
              %s1357 = smul.u32 8, %s1354
              %s1358 = scalar_lea.vmem %s1198, %s1357
              // While loop
              $region64: #{tpu_custom_call.1} parent=55 // loop_pre_header
                _
              $region65: #{tpu_custom_call.1} parent=55 // loop_header
                %s1360 = sphi 0, %s1362
                %p1361 = scmp.ge.s32.totalorder %s1360, %s1353
                %s1365 = sphi 0, %s1372
                %s1366 = sphi %s1356, %s1375
                %s1367 = sphi %s1358, %s1376
              $region66: #{tpu_custom_call.1} parent=55 // loop_header_branch
                %1364 = sbr.rel (%p1361) target = $region70
              $region67: #{tpu_custom_call.1} parent=55 // loop_body
                %v1368 = vld [vmem:[%s1366] sm:$0xff]
                %1369 = vst [vmem:[%s1367] sm:$0xff] %v1368
                %s1370 = sadd.s32 1, %s1365
                %p1371 = scmp.ge.s32.totalorder %s1370, %s1353
                %s1372 = scalar_select %p1371, 0, %s1370
                %s1373 = smul.u32 %s1372, 8
                %s1374 = smul.u32 %s1372, 8
                %s1375 = scalar_lea.vmem %s1356, %s1373 [#allocation2]
                %s1376 = scalar_lea.vmem %s1358, %s1374
              $region68: #{tpu_custom_call.1} parent=55 // loop_footer
                %s1362 = sadd.s32 %s1360, 1
              $region69: #{tpu_custom_call.1} parent=55 // loop_footer_branch
                %1359 = sbr.rel target = $region65
              $region70: #{tpu_custom_call.1} parent=55 // loop_exit
                _
            $region56: #{tpu_custom_call.1} parent=47 // pred_fallthru
              _
          $region48: #{tpu_custom_call.1} parent=43 // pred_fallthru
            _
          %1551 = vnop
        $region44: #{tpu_custom_call.1} parent=39 // pred_fallthru
          _
      $region40: #{tpu_custom_call.1} parent=5 // pred_fallthru
        _
      %p1552 = scmp.le.s32.totalorder 2, %s11
      // Predicated region
      $region93: #{tpu_custom_call.1} parent=5 // pred_check
        %p1553 = pneg %p1552
      $region94: #{tpu_custom_call.1} parent=5 // pred_check_branch
        %1555 = sbr.rel (%p1553) target = $region96
      $region95: #{tpu_custom_call.1} parent=5 // pred_region
        %s1556 = ssub.s32 %s11, 2
        // Predicated region
        $region97: #{tpu_custom_call.1} parent=95 // pred_check
          %p1557 = pneg %p150
        $region98: #{tpu_custom_call.1} parent=95 // pred_check_branch
          %1559 = sbr.rel (%p1557) target = $region100
        $region99: #{tpu_custom_call.1} parent=95 // pred_region
          %s1560 = sand.u32 %s135, 1
          %s1561 = sand.u32 %s135, 1
          %s1562 = smul.addr %s1561, 512
          %s1563 = scalar_lea.vmem [#allocation2], %s1562
        $region100: #{tpu_custom_call.1} parent=95 // pred_fallthru
          _
      $region96: #{tpu_custom_call.1} parent=5 // pred_fallthru
        _
    $region6: #{tpu_custom_call.1} parent=1 // loop_footer
      %s15 = sadd.s32 1, %s11
    $region7: #{tpu_custom_call.1} parent=1 // loop_footer_branch
      %10 = sbr.rel target = $region3
    $region8: #{tpu_custom_call.1} parent=1 // loop_exit
      _

</llo_original>
